<compile_context>
chip_gen: v7x
topology: tpu7x:2x2x1
jax: 0.10.0
libtpu: 0.0.40
codegen_flags: <defaults>
</compile_context>

<pallas_src>
import math
import numpy as np
import jax
import jax.numpy as jnp
from jax.experimental import pallas as pl
from jax.experimental.pallas import tpu as pltpu

# ---------------- irreps bookkeeping (mul, l, parity) ---------------------------------------
IRREPS_SH  = [(1, 0, +1), (1, 1, -1), (1, 2, +1), (1, 3, -1)]              # 1x0e+1x1o+1x2e+1x3o
IRREPS_MID = [(64, 0, +1), (24, 1, +1), (24, 1, -1), (16, 2, +1), (16, 2, -1)]
IRREPS_OUT = [(1, 0, -1), (6, 0, +1)]                                      # 0o + 6x0e


def irreps_dim(irr):
    return sum(mul * (2 * l + 1) for mul, l, _ in irr)


D_SH, D_MID, D_OUT = irreps_dim(IRREPS_SH), irreps_dim(IRREPS_MID), irreps_dim(IRREPS_OUT)  # 16,368,7
D_MID_PAD = 384          # 3 * 128, lane-aligned MXU K/N dim
D_OUT_PAD = 8
_SH_OFF = [0, 1, 4, 9]
MXU_DTYPE = jnp.bfloat16

GRAPHS_PER_TILE = 16     # graphs per grid tile
EDGES_PER_TILE = 128     # padded edge rows per grid tile (full MXU M tile on v5e)

INV_SQRT2 = 1.0 / math.sqrt(2.0)
POOL_SCALE = 1.0 / (math.sqrt(2.0) * math.sqrt(4.0))   # last scatter /sqrt(2) + pool /sqrt(4)


# ---------------- real spherical harmonics, 'component' normalization, normalize=False ------
def _sh_cols(x, y, z, xp):
    s3, s5, s7, s15, s105 = map(math.sqrt, (3.0, 5.0, 7.0, 15.0, 105.0))
    s21_8, s35_8 = math.sqrt(21.0 / 8.0), math.sqrt(35.0 / 8.0)
    x2, y2, z2 = x * x, y * y, z * z
    return [
        xp.ones_like(x),                                            # l=0
        s3 * y, s3 * z, s3 * x,                                     # l=1 (m=-1,0,1)
        s15 * x * y, s15 * y * z, 0.5 * s5 * (2 * z2 - x2 - y2),    # l=2
        s15 * x * z, 0.5 * s15 * (x2 - y2),
        s35_8 * y * (3 * x2 - y2), s105 * x * y * z,                # l=3
        s21_8 * y * (4 * z2 - x2 - y2),
        0.5 * s7 * z * (2 * z2 - 3 * x2 - 3 * y2),
        s21_8 * x * (4 * z2 - x2 - y2),
        0.5 * s105 * z * (x2 - y2),
        s35_8 * x * (x2 - 3 * y2),
    ]


def _sh_np(P):
    return np.stack(_sh_cols(P[:, 0], P[:, 1], P[:, 2], np), axis=-1)


# ---------------- SO(3) generators + Wigner-3j (self-consistent with the SH basis above) ----
def _rot(axis, t):
    a = np.zeros(3)
    a[axis] = 1.0
    K = np.array([[0, -a[2], a[1]], [a[2], 0, -a[0]], [-a[1], a[0], 0]])
    return np.eye(3) + math.sin(t) * K + (1.0 - math.cos(t)) * (K @ K)


def _generators():
    rng = np.random.RandomState(0)
    P = rng.randn(64, 3)

    def block(Q, l):
        o, d = _SH_OFF[l], 2 * l + 1
        return _sh_np(Q)[:, o:o + d]

    gens = {}
    for l in range(4):
        A = block(P, l)
        Apinv = np.linalg.pinv(A)
        Ks = []
        for ax in range(3):
            def D(t):
                return (Apinv @ block(P @ _rot(ax, t).T, l)).T
            t = 1e-2
            K = (8.0 * (D(t) - D(-t)) - (D(2 * t) - D(-2 * t))) / (12.0 * t)
            Ks.append(K)
        gens[l] = Ks
    return gens


def _wigner_3j(l1, l2, l3, gens):
    d1, d2, d3 = 2 * l1 + 1, 2 * l2 + 1, 2 * l3 + 1
    I1, I2, I3 = np.eye(d1), np.eye(d2), np.eye(d3)
    rows = []
    for ax in range(3):
        M = (np.kron(np.kron(gens[l1][ax], I2), I3)
             + np.kron(np.kron(I1, gens[l2][ax]), I3)
             + np.kron(np.kron(I1, I2), gens[l3][ax]))
        rows.append(M)
    M = np.concatenate(rows, axis=0)
    _, _, vt = np.linalg.svd(M)
    c = vt[-1]
    c = c / np.linalg.norm(c)
    i = int(np.argmax(np.abs(c)))
    if c[i] < 0:
        c = -c
    return c.reshape(d1, d2, d3)


# ---------------- FullyConnectedTensorProduct -> dense coupling tensor T[i, j, k] ----------
def _build_fctp(irr1, irr2, irr3, gens, key):
    def offsets(irr):
        off, out = 0, []
        for mul, l, _ in irr:
            out.append(off)
            off += mul * (2 * l + 1)
        return out

    o1, o2, o3 = offsets(irr1), offsets(irr2), offsets(irr3)
    ins = []
    for i, (m1, l1, p1) in enumerate(irr1):
        for j, (m2, l2, p2) in enumerate(irr2):
            for k, (m3, l3, p3) in enumerate(irr3):
                if p1 * p2 == p3 and abs(l1 - l2) <= l3 <= l1 + l2:
                    ins.append((i, j, k))
    fan_in = {}
    for i, j, k in ins:
        fan_in[k] = fan_in.get(k, 0) + irr1[i][0] * irr2[j][0]

    T = np.zeros((irreps_dim(irr1), irreps_dim(irr2), irreps_dim(irr3)), np.float64)
    for i, j, k in ins:
        m1, l1, _ = irr1[i]
        m2, l2, _ = irr2[j]
        m3, l3, _ = irr3[k]
        C = _wigner_3j(l1, l2, l3, gens)
        key, sub = jax.random.split(key)
        W = np.asarray(jax.random.normal(sub, (m1, m2, m3)), np.float64)   # weights ~ N(0,1)
        alpha = math.sqrt((2 * l3 + 1) / fan_in[k])
        blk = alpha * np.einsum('uvw,abc->uavbwc', W, C)
        T[o1[i]:o1[i] + m1 * (2 * l1 + 1),
          o2[j]:o2[j] + m2 * (2 * l2 + 1),
          o3[k]:o3[k] + m3 * (2 * l3 + 1)] += blk.reshape(m1 * (2 * l1 + 1),
                                                          m2 * (2 * l2 + 1),
                                                          m3 * (2 * l3 + 1))
    return T, key


# ---------------- host-side graph construction (glue) ---------------------------------------
def _radius_graph(pos, batch, r):
    src, dst = [], []
    n = pos.shape[0]
    for i in range(n):
        for j in range(n):
            if i != j and batch[i] == batch[j] and np.linalg.norm(pos[i] - pos[j]) < r:
                src.append(i)
                dst.append(j)
    return np.array(src, np.int32), np.array(dst, np.int32)


# ---------------- Pallas kernel --------------------------------------------------------------
def _kernel(sh_ref, a_ref, p_ref, sel_sh_ref, sel_x_ref, sel_sh8_ref, sel_col_ref,
            t1_ref, t2_ref, out_ref):
    """One graph-block tile: edge->edge propagation + both tensor products + per-graph pooling.

      sh   : (1, EPT, 16)   edge spherical harmonics (f32)
      a    : (1, EPT, EPT)  0/1 edge->edge propagation (dst[e']==src[e]), bf16
      p    : (1, GPT, EPT)  0/1 edge->graph pooling (batch[dst[e']]==g), bf16
      sel_sh/sel_x : (16, 256)  0/1 Khatri-Rao selectors for tp1, bf16
      sel_sh8      : (16, 128)  kron(I16, ones(1,8)), bf16
      sel_col      : (128, 8)   tile(I8, (16,1)) group-collapse selector, bf16
      t1   : (256, 384)  flattened/padded tp1 coupling tensor, bf16
      t2   : (384, 128)  reshaped/padded tp2 coupling tensor t2r[i, j*8+k], bf16
    """
    f32 = jnp.float32
    bf16 = jnp.bfloat16

    sh = sh_ref[0]                                                     # (EPT, 16) f32
    sh_b = sh.astype(bf16)
    A = a_ref[0]                                                       # (EPT, EPT) bf16

    # node_features[edge_src] after the first scatter/gather hop.
    x1 = jnp.dot(A, sh_b, preferred_element_type=f32) * INV_SQRT2      # (EPT, 16)

    # tp1 as ONE Khatri-Rao matmul, K = 16*16 = 256.
    sh_rep = jnp.dot(sh_b, sel_sh_ref[...], preferred_element_type=f32)               # (EPT, 256)
    x1_rep = jnp.dot(x1.astype(bf16), sel_x_ref[...], preferred_element_type=f32)     # (EPT, 256)
    z1 = (sh_rep * x1_rep).astype(bf16)
    ef1 = jnp.dot(z1, t1_ref[...], preferred_element_type=f32)                        # (EPT, 384)

    # second scatter/gather hop
    x2 = jnp.dot(A, ef1.astype(bf16), preferred_element_type=f32) * INV_SQRT2         # (EPT, 384)

    # tp2 restructured: y[e, j*8+k] = sum_i x2[e,i] T2p[i,j,k]; multiply by sh[e,j];
    # collapse the 16 groups of 8 with a 0/1 selector matmul.
    y = jnp.dot(x2.astype(bf16), t2_ref[...], preferred_element_type=f32)             # (EPT, 128)
    sh_exp = jnp.dot(sh_b, sel_sh8_ref[...], preferred_element_type=f32)              # (EPT, 128)
    z2 = (y * sh_exp).astype(bf16)
    ef2 = jnp.dot(z2, sel_col_ref[...], preferred_element_type=f32)                   # (EPT, 8)

    # final scatter to nodes + per-graph pooling (scales applied as one f32 scalar multiply)
    out = jnp.dot(p_ref[0], ef2.astype(bf16), preferred_element_type=f32)             # (GPT, 8)
    out_ref[0] = out * POOL_SCALE


def invariant_polynomial_pallas(pos, batch, T1, T2, num_graphs):
    pos_np = np.asarray(pos, np.float32)
    batch_np = np.asarray(batch, np.int32)
    src, dst = _radius_graph(pos_np, batch_np, r=1.1)     # TODO(synk): host-side graph construction
    G = int(num_graphs)
    GPT, EPT = GRAPHS_PER_TILE, EDGES_PER_TILE
    assert G % GPT == 0, "num_graphs must be a multiple of GRAPHS_PER_TILE"
    n_tiles = G // GPT

    # ---- per-tile structural matrices (all exact 0/1; normalization applied in-kernel) ----
    edge_graph = batch_np[src]                 # graph id of every edge (== batch_np[dst])
    edge_tile = edge_graph // GPT
    A = np.zeros((n_tiles, EPT, EPT), np.float32)
    P = np.zeros((n_tiles, GPT, EPT), np.float32)
    ev = np.zeros((n_tiles, EPT, 3), np.float32)
    for t in range(n_tiles):
        idx = np.nonzero(edge_tile == t)[0]
        ne = idx.size
        assert ne <= EPT, f"tile {t} has {ne} edges > EDGES_PER_TILE={EPT}"
        s, d = src[idx], dst[idx]
        ev[t, :ne] = pos_np[s] - pos_np[d]
        A[t, :ne, :ne] = (s[:, None] == d[None, :]).astype(np.float32)      # dst[e']==src[e]
        P[t, batch_np[d] - t * GPT, np.arange(ne)] = 1.0                    # batch[dst[e']]==g
    # Padded edge rows have sh=[1,0,...]; they are nulled because their A / P COLUMNS are zero.

    # ---- flattened Khatri-Rao coupling tensors (bf16 MXU operands) ----
    T1p = np.zeros((D_SH, D_SH, D_MID_PAD), np.float32)
    T1p[:, :, :D_MID] = T1
    t1_flat = np.transpose(T1p, (1, 0, 2)).reshape(D_SH * D_SH, D_MID_PAD)  # (256, 384)
    T2p = np.zeros((D_MID_PAD, D_SH, D_OUT_PAD), np.float32)
    T2p[:D_MID, :, :D_OUT] = T2
    t2r = T2p.reshape(D_MID_PAD, D_SH * D_OUT_PAD)                          # (384, 128)

    # ---- 0/1 selector matrices (exact in bf16) ----
    sel_sh = np.kron(np.eye(D_SH, dtype=np.float32), np.ones((1, D_SH), np.float32))       # (16,256)
    sel_x = np.tile(np.eye(D_SH, dtype=np.float32), (1, D_SH))                             # (16,256)
    sel_sh8 = np.kron(np.eye(D_SH, dtype=np.float32), np.ones((1, D_OUT_PAD), np.float32))  # (16,128)
    sel_col = np.tile(np.eye(D_OUT_PAD, dtype=np.float32), (D_SH, 1))                      # (128,8)

    # ---- spherical harmonics in the XLA wrapper (already in the tiled/padded layout) ----
    ev_flat = jnp.asarray(ev.reshape(n_tiles * EPT, 3))
    sh = jnp.concatenate(_sh_cols(ev_flat[:, 0:1], ev_flat[:, 1:2], ev_flat[:, 2:3], jnp), axis=-1)
    sh = sh.reshape(n_tiles, EPT, D_SH).astype(jnp.float32)

    out = pl.pallas_call(
        _kernel,
        grid=(n_tiles,),
        in_specs=[
            pl.BlockSpec((1, EPT, D_SH), lambda i: (i, 0, 0)),          # sh
            pl.BlockSpec((1, EPT, EPT), lambda i: (i, 0, 0)),           # A (per-tile block)
            pl.BlockSpec((1, GPT, EPT), lambda i: (i, 0, 0)),           # P (per-tile block)
            pl.BlockSpec((D_SH, D_SH * D_SH), lambda i: (0, 0)),        # sel_sh
            pl.BlockSpec((D_SH, D_SH * D_SH), lambda i: (0, 0)),        # sel_x
            pl.BlockSpec((D_SH, D_SH * D_OUT_PAD), lambda i: (0, 0)),   # sel_sh8
            pl.BlockSpec((D_SH * D_OUT_PAD, D_OUT_PAD), lambda i: (0, 0)),  # sel_col
            pl.BlockSpec((D_SH * D_SH, D_MID_PAD), lambda i: (0, 0)),   # t1
            pl.BlockSpec((D_MID_PAD, D_SH * D_OUT_PAD), lambda i: (0, 0)),  # t2r
        ],
        out_specs=pl.BlockSpec((1, GPT, D_OUT_PAD), lambda i: (i, 0, 0)),
        out_shape=jax.ShapeDtypeStruct((n_tiles, GPT, D_OUT_PAD), jnp.float32),
        compiler_params=pltpu.CompilerParams(dimension_semantics=("parallel",)),
    )(sh,
      jnp.asarray(A, MXU_DTYPE), jnp.asarray(P, MXU_DTYPE),
      jnp.asarray(sel_sh, MXU_DTYPE), jnp.asarray(sel_x, MXU_DTYPE),
      jnp.asarray(sel_sh8, MXU_DTYPE), jnp.asarray(sel_col, MXU_DTYPE),
      jnp.asarray(t1_flat, MXU_DTYPE), jnp.asarray(t2r, MXU_DTYPE))

    out = out.reshape(n_tiles * GPT, D_OUT_PAD)[:G, :D_OUT]
    return out, (src, dst)


# ---------------- float64 NumPy reference (independent of padding / tiling / bf16) ----------
def reference_forward_np(pos, batch, src, dst, T1, T2, num_graphs):
    pos = np.asarray(pos, np.float64)
    batch = np.asarray(batch)
    ev = pos[src] - pos[dst]
    sh = np.stack(_sh_cols(ev[:, 0], ev[:, 1], ev[:, 2], np), axis=-1)
    N = pos.shape[0]

    def scat(v, idx, n):
        o = np.zeros((n, v.shape[1]), np.float64)
        np.add.at(o, idx, v)
        return o

    nf = scat(sh, dst, N) / math.sqrt(2)
    ef = np.einsum('ei,ej,ijk->ek', nf[src], sh, np.asarray(T1, np.float64), optimize=True)
    nf = scat(ef, dst, N) / math.sqrt(2)
    ef = np.einsum('ei,ej,ijk->ek', nf[src], sh, np.asarray(T2, np.float64), optimize=True)
    nf = scat(ef, dst, N) / math.sqrt(2)
    return scat(nf, batch, num_graphs) / math.sqrt(4)


if __name__ == "__main__":
    key = jax.random.PRNGKey(0)

    # deterministic parameters (synthetic weights; same shapes as the e3nn module)
    gens = _generators()
    T1, key = _build_fctp(IRREPS_SH, IRREPS_SH, IRREPS_MID, gens, key)    # (16, 16, 368)
    T2, key = _build_fctp(IRREPS_MID, IRREPS_SH, IRREPS_OUT, gens, key)   # (368, 16, 7)

    # example inputs: 32 tetris-like graphs x 4 nodes (alternating "I" / "L"), unit lattice
    # spacing so r=1.1 links nearest neighbours only.  32 graphs -> 192 edges -> two 128-row tiles.
    shape_I = np.array([[0, 0, 0], [0, 0, 1], [0, 0, 2], [0, 0, 3]], np.float32)
    shape_L = np.array([[0, 0, 0], [0, 0, 1], [0, 0, 2], [0, 1, 0]], np.float32)
    G = 32
    pos = np.concatenate([shape_I if g % 2 == 0 else shape_L for g in range(G)], axis=0)
    batch = np.repeat(np.arange(G, dtype=np.int32), 4)
    key, sub = jax.random.split(key)
    pos = pos + 0.01 * np.asarray(jax.random.normal(sub, pos.shape), np.float32)  # tiny jitter

    out, (src, dst) = invariant_polynomial_pallas(pos, batch, T1, T2, num_graphs=G)
    out = jax.block_until_ready(out)

    # tolerance reflects the bf16 MXU operands (f32 accumulation); atol scaled by output magnitude
    ref = reference_forward_np(pos, batch, src, dst, T1, T2, G)
    scale = float(np.abs(ref).max())
    np.testing.assert_allclose(np.asarray(out, np.float64), ref, rtol=5e-2, atol=5e-2 * scale)
    assert out.shape == (G, D_OUT) and out.dtype == jnp.float32
    print("KERNEL_OK")
</pallas_src>

<mosaic_0001>
module attributes {stable_mosaic.version = 11 : i64} {
  func.func @_kernel(%arg0: i32, %arg1: memref<1x128x16xf32, #tpu.memory_space<vmem>>, %arg2: memref<1x128x128xbf16, #tpu.memory_space<vmem>>, %arg3: memref<1x16x128xbf16, #tpu.memory_space<vmem>>, %arg4: memref<16x256xbf16, #tpu.memory_space<vmem>>, %arg5: memref<16x256xbf16, #tpu.memory_space<vmem>>, %arg6: memref<16x128xbf16, #tpu.memory_space<vmem>>, %arg7: memref<128x8xbf16, #tpu.memory_space<vmem>>, %arg8: memref<256x384xbf16, #tpu.memory_space<vmem>>, %arg9: memref<384x128xbf16, #tpu.memory_space<vmem>>, %arg10: memref<1x16x8xf32, #tpu.memory_space<vmem>>) attributes {dimension_semantics = [#tpu.dimension_semantics<parallel>], iteration_bounds = array<i64: 2>, scalar_prefetch = 0 : i64, scratch_operands = 0 : i64, tpu.core_type = #tpu.core_type<tc>, window_params = [{transform_indices = @transform_0, window_bounds = array<i64: 1, 128, 16>}, {transform_indices = @transform_1, window_bounds = array<i64: 1, 128, 128>}, {transform_indices = @transform_2, window_bounds = array<i64: 1, 16, 128>}, {pipeline_mode = #tpu.pipeline_mode<synchronous>, transform_indices = @transform_3, window_bounds = array<i64: 16, 256>}, {pipeline_mode = #tpu.pipeline_mode<synchronous>, transform_indices = @transform_4, window_bounds = array<i64: 16, 256>}, {pipeline_mode = #tpu.pipeline_mode<synchronous>, transform_indices = @transform_5, window_bounds = array<i64: 16, 128>}, {pipeline_mode = #tpu.pipeline_mode<synchronous>, transform_indices = @transform_6, window_bounds = array<i64: 128, 8>}, {pipeline_mode = #tpu.pipeline_mode<synchronous>, transform_indices = @transform_7, window_bounds = array<i64: 256, 384>}, {pipeline_mode = #tpu.pipeline_mode<synchronous>, transform_indices = @transform_8, window_bounds = array<i64: 384, 128>}, {transform_indices = @transform_9, window_bounds = array<i64: 1, 16, 8>}]} {
    %c0 = arith.constant 0 : index
    %c0_0 = arith.constant 0 : index
    %c0_1 = arith.constant 0 : index
    %0 = vector.load %arg1[%c0, %c0_0, %c0_1] : memref<1x128x16xf32, #tpu.memory_space<vmem>>, vector<1x128x16xf32>
    %1 = vector.shape_cast %0 : vector<1x128x16xf32> to vector<128x16xf32>
    %2 = arith.truncf %1 : vector<128x16xf32> to vector<128x16xbf16>
    %c0_2 = arith.constant 0 : index
    %c0_3 = arith.constant 0 : index
    %c0_4 = arith.constant 0 : index
    %3 = vector.load %arg2[%c0_2, %c0_3, %c0_4] : memref<1x128x128xbf16, #tpu.memory_space<vmem>>, vector<1x128x128xbf16>
    %4 = vector.shape_cast %3 : vector<1x128x128xbf16> to vector<128x128xbf16>
    %cst = arith.constant dense<0.000000e+00> : vector<128x16xf32>
    %5 = tpu.matmul %4, %2, %cst {dimension_numbers = #tpu.dot_dimension_numbers<[1], [0], [0], [1], [0, 0, 1, 1], [], []>} : vector<128x128xbf16>, vector<128x16xbf16>, vector<128x16xf32> -> vector<128x16xf32>
    %cst_5 = arith.constant 0.707106769 : f32
    %6 = vector.broadcast %cst_5 : f32 to vector<128x16xf32>
    %7 = arith.mulf %5, %6 : vector<128x16xf32>
    %c0_6 = arith.constant 0 : index
    %c0_7 = arith.constant 0 : index
    %8 = vector.load %arg4[%c0_6, %c0_7] : memref<16x256xbf16, #tpu.memory_space<vmem>>, vector<16x256xbf16>
    %cst_8 = arith.constant dense<0.000000e+00> : vector<128x256xf32>
    %9 = tpu.matmul %2, %8, %cst_8 {dimension_numbers = #tpu.dot_dimension_numbers<[1], [0], [0], [1], [0, 0, 1, 1], [], []>} : vector<128x16xbf16>, vector<16x256xbf16>, vector<128x256xf32> -> vector<128x256xf32>
    %10 = arith.truncf %7 : vector<128x16xf32> to vector<128x16xbf16>
    %c0_9 = arith.constant 0 : index
    %c0_10 = arith.constant 0 : index
    %11 = vector.load %arg5[%c0_9, %c0_10] : memref<16x256xbf16, #tpu.memory_space<vmem>>, vector<16x256xbf16>
    %cst_11 = arith.constant dense<0.000000e+00> : vector<128x256xf32>
    %12 = tpu.matmul %10, %11, %cst_11 {dimension_numbers = #tpu.dot_dimension_numbers<[1], [0], [0], [1], [0, 0, 1, 1], [], []>} : vector<128x16xbf16>, vector<16x256xbf16>, vector<128x256xf32> -> vector<128x256xf32>
    %13 = arith.mulf %9, %12 : vector<128x256xf32>
    %14 = arith.truncf %13 : vector<128x256xf32> to vector<128x256xbf16>
    %c0_12 = arith.constant 0 : index
    %c0_13 = arith.constant 0 : index
    %15 = vector.load %arg8[%c0_12, %c0_13] : memref<256x384xbf16, #tpu.memory_space<vmem>>, vector<256x384xbf16>
    %cst_14 = arith.constant dense<0.000000e+00> : vector<128x384xf32>
    %16 = tpu.matmul %14, %15, %cst_14 {dimension_numbers = #tpu.dot_dimension_numbers<[1], [0], [0], [1], [0, 0, 1, 1], [], []>} : vector<128x256xbf16>, vector<256x384xbf16>, vector<128x384xf32> -> vector<128x384xf32>
    %17 = arith.truncf %16 : vector<128x384xf32> to vector<128x384xbf16>
    %cst_15 = arith.constant dense<0.000000e+00> : vector<128x384xf32>
    %18 = tpu.matmul %4, %17, %cst_15 {dimension_numbers = #tpu.dot_dimension_numbers<[1], [0], [0], [1], [0, 0, 1, 1], [], []>} : vector<128x128xbf16>, vector<128x384xbf16>, vector<128x384xf32> -> vector<128x384xf32>
    %cst_16 = arith.constant 0.707106769 : f32
    %19 = vector.broadcast %cst_16 : f32 to vector<128x384xf32>
    %20 = arith.mulf %18, %19 : vector<128x384xf32>
    %21 = arith.truncf %20 : vector<128x384xf32> to vector<128x384xbf16>
    %c0_17 = arith.constant 0 : index
    %c0_18 = arith.constant 0 : index
    %22 = vector.load %arg9[%c0_17, %c0_18] : memref<384x128xbf16, #tpu.memory_space<vmem>>, vector<384x128xbf16>
    %cst_19 = arith.constant dense<0.000000e+00> : vector<128x128xf32>
    %23 = tpu.matmul %21, %22, %cst_19 {dimension_numbers = #tpu.dot_dimension_numbers<[1], [0], [0], [1], [0, 0, 1, 1], [], []>} : vector<128x384xbf16>, vector<384x128xbf16>, vector<128x128xf32> -> vector<128x128xf32>
    %c0_20 = arith.constant 0 : index
    %c0_21 = arith.constant 0 : index
    %24 = vector.load %arg6[%c0_20, %c0_21] : memref<16x128xbf16, #tpu.memory_space<vmem>>, vector<16x128xbf16>
    %cst_22 = arith.constant dense<0.000000e+00> : vector<128x128xf32>
    %25 = tpu.matmul %2, %24, %cst_22 {dimension_numbers = #tpu.dot_dimension_numbers<[1], [0], [0], [1], [0, 0, 1, 1], [], []>} : vector<128x16xbf16>, vector<16x128xbf16>, vector<128x128xf32> -> vector<128x128xf32>
    %26 = arith.mulf %23, %25 : vector<128x128xf32>
    %27 = arith.truncf %26 : vector<128x128xf32> to vector<128x128xbf16>
    %c0_23 = arith.constant 0 : index
    %c0_24 = arith.constant 0 : index
    %28 = vector.load %arg7[%c0_23, %c0_24] : memref<128x8xbf16, #tpu.memory_space<vmem>>, vector<128x8xbf16>
    %cst_25 = arith.constant dense<0.000000e+00> : vector<128x8xf32>
    %29 = tpu.matmul %27, %28, %cst_25 {dimension_numbers = #tpu.dot_dimension_numbers<[1], [0], [0], [1], [0, 0, 1, 1], [], []>} : vector<128x128xbf16>, vector<128x8xbf16>, vector<128x8xf32> -> vector<128x8xf32>
    %c0_26 = arith.constant 0 : index
    %c0_27 = arith.constant 0 : index
    %c0_28 = arith.constant 0 : index
    %30 = vector.load %arg3[%c0_26, %c0_27, %c0_28] : memref<1x16x128xbf16, #tpu.memory_space<vmem>>, vector<1x16x128xbf16>
    %31 = vector.shape_cast %30 : vector<1x16x128xbf16> to vector<16x128xbf16>
    %32 = arith.truncf %29 : vector<128x8xf32> to vector<128x8xbf16>
    %cst_29 = arith.constant dense<0.000000e+00> : vector<16x8xf32>
    %33 = tpu.matmul %31, %32, %cst_29 {dimension_numbers = #tpu.dot_dimension_numbers<[1], [0], [0], [1], [0, 0, 1, 1], [], []>} : vector<16x128xbf16>, vector<128x8xbf16>, vector<16x8xf32> -> vector<16x8xf32>
    %cst_30 = arith.constant 0.353553385 : f32
    %34 = vector.broadcast %cst_30 : f32 to vector<16x8xf32>
    %35 = arith.mulf %33, %34 : vector<16x8xf32>
    %c0_31 = arith.constant 0 : index
    %c0_32 = arith.constant 0 : index
    %c0_33 = arith.constant 0 : index
    %36 = vector.load %arg10[%c0_31, %c0_32, %c0_33] : memref<1x16x8xf32, #tpu.memory_space<vmem>>, vector<1x16x8xf32>
    %37 = vector.shape_cast %36 : vector<1x16x8xf32> to vector<16x8xf32>
    %38 = vector.shape_cast %35 : vector<16x8xf32> to vector<1x16x8xf32>
    tpu.vector_store %arg10[%c0_31, %c0_32, %c0_33], %38 {strides = array<i32>} : memref<1x16x8xf32, #tpu.memory_space<vmem>>, vector<1x16x8xf32>,
    return
  }
  func.func @transform_0(%arg0: i32) -> (i32, i32, i32) {
    %c0_i32 = arith.constant 0 : i32
    %c0_i32_0 = arith.constant 0 : i32
    %c0_i32_1 = arith.constant 0 : i32
    return %arg0, %c0_i32, %c0_i32_0 : i32, i32, i32
  }
  func.func @transform_1(%arg0: i32) -> (i32, i32, i32) {
    %c0_i32 = arith.constant 0 : i32
    %c0_i32_0 = arith.constant 0 : i32
    %c0_i32_1 = arith.constant 0 : i32
    return %arg0, %c0_i32, %c0_i32_0 : i32, i32, i32
  }
  func.func @transform_2(%arg0: i32) -> (i32, i32, i32) {
    %c0_i32 = arith.constant 0 : i32
    %c0_i32_0 = arith.constant 0 : i32
    %c0_i32_1 = arith.constant 0 : i32
    return %arg0, %c0_i32, %c0_i32_0 : i32, i32, i32
  }
  func.func @transform_3(%arg0: i32) -> (i32, i32) {
    %c0_i32 = arith.constant 0 : i32
    %c0_i32_0 = arith.constant 0 : i32
    %c0_i32_1 = arith.constant 0 : i32
    return %c0_i32, %c0_i32_0 : i32, i32
  }
  func.func @transform_4(%arg0: i32) -> (i32, i32) {
    %c0_i32 = arith.constant 0 : i32
    %c0_i32_0 = arith.constant 0 : i32
    %c0_i32_1 = arith.constant 0 : i32
    return %c0_i32, %c0_i32_0 : i32, i32
  }
  func.func @transform_5(%arg0: i32) -> (i32, i32) {
    %c0_i32 = arith.constant 0 : i32
    %c0_i32_0 = arith.constant 0 : i32
    %c0_i32_1 = arith.constant 0 : i32
    return %c0_i32, %c0_i32_0 : i32, i32
  }
  func.func @transform_6(%arg0: i32) -> (i32, i32) {
    %c0_i32 = arith.constant 0 : i32
    %c0_i32_0 = arith.constant 0 : i32
    %c0_i32_1 = arith.constant 0 : i32
    return %c0_i32, %c0_i32_0 : i32, i32
  }
  func.func @transform_7(%arg0: i32) -> (i32, i32) {
    %c0_i32 = arith.constant 0 : i32
    %c0_i32_0 = arith.constant 0 : i32
    %c0_i32_1 = arith.constant 0 : i32
    return %c0_i32, %c0_i32_0 : i32, i32
  }
  func.func @transform_8(%arg0: i32) -> (i32, i32) {
    %c0_i32 = arith.constant 0 : i32
    %c0_i32_0 = arith.constant 0 : i32
    %c0_i32_1 = arith.constant 0 : i32
    return %c0_i32, %c0_i32_0 : i32, i32
  }
  func.func @transform_9(%arg0: i32) -> (i32, i32, i32) {
    %c0_i32 = arith.constant 0 : i32
    %c0_i32_0 = arith.constant 0 : i32
    %c0_i32_1 = arith.constant 0 : i32
    return %arg0, %c0_i32, %c0_i32_0 : i32, i32, i32
  }
}

</mosaic_0001>

<llo_original>
// kernel: tpu_custom_call.1
$region0: #{tpu_custom_call.1}
  #allocation0 [shape = 'u32[]', space=smem, size = 0x4, offset = 0x4, fixed_abs, tag = 'smem constant byte address 0x4 - core index']
  #allocation1 [shape = 'u32[144,128]{1,0:T(1,128)}', space=vmem, size = 0x12000, scoped, tag = 'internal scratch']
  %s0 = inlined_call_operand.vmem [shape: f32[2,128,16], index: 0, kind: input, shape index: {}]
  %s1 = inlined_call_operand.vmem [shape: bf16[2,128,128], index: 1, kind: input, shape index: {}]
  %s2 = inlined_call_operand.vmem [shape: bf16[2,16,128], index: 2, kind: input, shape index: {}]
  %s3 = inlined_call_operand.vmem [shape: bf16[16,256], index: 3, kind: input, shape index: {}]
  %s4 = inlined_call_operand.vmem [shape: bf16[16,256], index: 4, kind: input, shape index: {}]
  %s5 = inlined_call_operand.vmem [shape: bf16[16,128], index: 5, kind: input, shape index: {}]
  %s6 = inlined_call_operand.vmem [shape: bf16[128,8], index: 6, kind: input, shape index: {}]
  %s7 = inlined_call_operand.hbm [shape: bf16[256,384], index: 7, kind: input, shape index: {}]
  %s8 = inlined_call_operand.vmem [shape: bf16[384,128], index: 8, kind: input, shape index: {}]
  %s9 = inlined_call_operand.vmem [shape: f32[2,16,8], index: 9, kind: output, shape index: {}]
  %s10 = sld [smem:[#allocation0]]
  $region73: #{tpu_custom_call.1} parent=0
    _
  %s12 = ssub.s32 1, %s10
  %s13 = scalar_select 0, %s12, %s10
  $region1: #{tpu_custom_call.1} parent=0
    #allocation2 [shape = 'u8[196608]{0}', space=vmem, size = 0x30000, scoped, tag = 'input window, operand 7, single buffered']
    #allocation3 [shape = 's32[2]{0}', space=sflag, size = 0x8, scoped, tag = 'scoped memory for tpu_custom_call.1']
    %14 = vsyncpa [#allocation3], 0
    loop: start=0, step=1, limit=4
    $region2: #{tpu_custom_call.1} parent=1 // loop_pre_header
      _
    $region3: #{tpu_custom_call.1} parent=1 // loop_header
      %s16 = sphi 0, %s20
      %p17 = scmp.ge.s32.totalorder %s16, 4
      %s26 = sphi 0, %s28
      %s29 = sphi 0, %s26
      %s30 = sphi 0, %s29
      %s46 = sphi 0, %s30
      %s52 = sphi 0, %s54
      %s55 = sphi 0, %s52
      %s56 = sphi 0, %s55
      %s72 = sphi 0, %s56
      %s78 = sphi 0, %s80
      %s81 = sphi 0, %s78
      %s82 = sphi 0, %s81
      %s98 = sphi 0, %s82
      %s102 = sphi 0, %s102
      %s104 = sphi 0, %s102
      %s105 = sphi 0, %s104
      %s119 = sphi 0, %s105
      %s123 = sphi 0, %s123
      %s125 = sphi 0, %s123
      %s126 = sphi 0, %s125
      %s140 = sphi 0, %s126
      %s144 = sphi 0, %s144
      %s146 = sphi 0, %s144
      %s147 = sphi 0, %s146
      %s161 = sphi 0, %s147
      %s165 = sphi 0, %s165
      %s167 = sphi 0, %s165
      %s168 = sphi 0, %s167
      %s182 = sphi 0, %s168
      %s186 = sphi 0, %s186
      %s188 = sphi 0, %s186
      %s189 = sphi 0, %s188
      %s203 = sphi 0, %s189
      %s207 = sphi 0, %s207
      %s209 = sphi 0, %s207
      %s210 = sphi 0, %s209
      %s224 = sphi 0, %s210
      %s230 = sphi 0, %s232
      %s233 = sphi 0, %s230
      %s234 = sphi 0, %s233
      %s250 = sphi 0, %s234
    $region4: #{tpu_custom_call.1} parent=1 // loop_header_branch
      %19 = sbr.rel (%p17) target = $region8
    $region5: #{tpu_custom_call.1} parent=1 // loop_body
      %s21 = ssub.s32 %s16, 1
      %s22 = ssub.s32 %s16, 2
      %s23 = sadd.s32 %s16, 1
      %s24 = ssub.s32 %s16, %s23
      %p25 = scmp.eq.s32.totalorder %s24, 0
      %s27 = sadd.s32 %s26, 1
      %s28 = scalar_select %p25, %s26, %s27
      %p31 = pneg %p25
      %p32 = scmp.eq.s32.totalorder %s16, 1
      %p33 = por %p31, %p32
      %p34 = scmp.ne.s32.totalorder %s26, %s29
      %p35 = scmp.eq.s32.totalorder %s16, 0
      %p36 = por %p34, %p35
      %p37 = scmp.ne.s32.totalorder %s26, %s29
      %p38 = scmp.eq.s32.totalorder %s21, 1
      %p39 = por %p37, %p38
      %p40 = scmp.ne.s32.totalorder %s29, %s30
      %p41 = scmp.eq.s32.totalorder %s21, 0
      %p42 = por %p40, %p41
      %p43 = scmp.ne.s32.totalorder %s29, %s30
      %p44 = scmp.eq.s32.totalorder %s22, 1
      %p45 = por %p43, %p44
      %p47 = scmp.ne.s32.totalorder %s30, %s46
      %p48 = scmp.eq.s32.totalorder %s22, 0
      %p49 = por %p47, %p48
      %s50 = ssub.s32 %s16, %s23
      %p51 = scmp.eq.s32.totalorder %s50, 0
      %s53 = sadd.s32 %s52, 1
      %s54 = scalar_select %p51, %s52, %s53
      %p57 = pneg %p51
      %p58 = scmp.eq.s32.totalorder %s16, 1
      %p59 = por %p57, %p58
      %p60 = scmp.ne.s32.totalorder %s52, %s55
      %p61 = scmp.eq.s32.totalorder %s16, 0
      %p62 = por %p60, %p61
      %p63 = scmp.ne.s32.totalorder %s52, %s55
      %p64 = scmp.eq.s32.totalorder %s21, 1
      %p65 = por %p63, %p64
      %p66 = scmp.ne.s32.totalorder %s55, %s56
      %p67 = scmp.eq.s32.totalorder %s21, 0
      %p68 = por %p66, %p67
      %p69 = scmp.ne.s32.totalorder %s55, %s56
      %p70 = scmp.eq.s32.totalorder %s22, 1
      %p71 = por %p69, %p70
      %p73 = scmp.ne.s32.totalorder %s56, %s72
      %p74 = scmp.eq.s32.totalorder %s22, 0
      %p75 = por %p73, %p74
      %s76 = ssub.s32 %s16, %s23
      %p77 = scmp.eq.s32.totalorder %s76, 0
      %s79 = sadd.s32 %s78, 1
      %s80 = scalar_select %p77, %s78, %s79
      %p83 = pneg %p77
      %p84 = scmp.eq.s32.totalorder %s16, 1
      %p85 = por %p83, %p84
      %p86 = scmp.ne.s32.totalorder %s78, %s81
      %p87 = scmp.eq.s32.totalorder %s16, 0
      %p88 = por %p86, %p87
      %p89 = scmp.ne.s32.totalorder %s78, %s81
      %p90 = scmp.eq.s32.totalorder %s21, 1
      %p91 = por %p89, %p90
      %p92 = scmp.ne.s32.totalorder %s81, %s82
      %p93 = scmp.eq.s32.totalorder %s21, 0
      %p94 = por %p92, %p93
      %p95 = scmp.ne.s32.totalorder %s81, %s82
      %p96 = scmp.eq.s32.totalorder %s22, 1
      %p97 = por %p95, %p96
      %p99 = scmp.ne.s32.totalorder %s82, %s98
      %p100 = scmp.eq.s32.totalorder %s22, 0
      %p101 = por %p99, %p100
      %s103 = sadd.s32 %s102, 1
      %p106 = scmp.eq.s32.totalorder %s16, 1
      %p107 = scmp.ne.s32.totalorder %s102, %s104
      %p108 = scmp.eq.s32.totalorder %s16, 0
      %p109 = por %p107, %p108
      %p110 = scmp.ne.s32.totalorder %s102, %s104
      %p111 = scmp.eq.s32.totalorder %s21, 1
      %p112 = por %p110, %p111
      %p113 = scmp.ne.s32.totalorder %s104, %s105
      %p114 = scmp.eq.s32.totalorder %s21, 0
      %p115 = por %p113, %p114
      %p116 = scmp.ne.s32.totalorder %s104, %s105
      %p117 = scmp.eq.s32.totalorder %s22, 1
      %p118 = por %p116, %p117
      %p120 = scmp.ne.s32.totalorder %s105, %s119
      %p121 = scmp.eq.s32.totalorder %s22, 0
      %p122 = por %p120, %p121
      %s124 = sadd.s32 %s123, 1
      %p127 = scmp.eq.s32.totalorder %s16, 1
      %p128 = scmp.ne.s32.totalorder %s123, %s125
      %p129 = scmp.eq.s32.totalorder %s16, 0
      %p130 = por %p128, %p129
      %p131 = scmp.ne.s32.totalorder %s123, %s125
      %p132 = scmp.eq.s32.totalorder %s21, 1
      %p133 = por %p131, %p132
      %p134 = scmp.ne.s32.totalorder %s125, %s126
      %p135 = scmp.eq.s32.totalorder %s21, 0
      %p136 = por %p134, %p135
      %p137 = scmp.ne.s32.totalorder %s125, %s126
      %p138 = scmp.eq.s32.totalorder %s22, 1
      %p139 = por %p137, %p138
      %p141 = scmp.ne.s32.totalorder %s126, %s140
      %p142 = scmp.eq.s32.totalorder %s22, 0
      %p143 = por %p141, %p142
      %s145 = sadd.s32 %s144, 1
      %p148 = scmp.eq.s32.totalorder %s16, 1
      %p149 = scmp.ne.s32.totalorder %s144, %s146
      %p150 = scmp.eq.s32.totalorder %s16, 0
      %p151 = por %p149, %p150
      %p152 = scmp.ne.s32.totalorder %s144, %s146
      %p153 = scmp.eq.s32.totalorder %s21, 1
      %p154 = por %p152, %p153
      %p155 = scmp.ne.s32.totalorder %s146, %s147
      %p156 = scmp.eq.s32.totalorder %s21, 0
      %p157 = por %p155, %p156
      %p158 = scmp.ne.s32.totalorder %s146, %s147
      %p159 = scmp.eq.s32.totalorder %s22, 1
      %p160 = por %p158, %p159
      %p162 = scmp.ne.s32.totalorder %s147, %s161
      %p163 = scmp.eq.s32.totalorder %s22, 0
      %p164 = por %p162, %p163
      %s166 = sadd.s32 %s165, 1
      %p169 = scmp.eq.s32.totalorder %s16, 1
      %p170 = scmp.ne.s32.totalorder %s165, %s167
      %p171 = scmp.eq.s32.totalorder %s16, 0
      %p172 = por %p170, %p171
      %p173 = scmp.ne.s32.totalorder %s165, %s167
      %p174 = scmp.eq.s32.totalorder %s21, 1
      %p175 = por %p173, %p174
      %p176 = scmp.ne.s32.totalorder %s167, %s168
      %p177 = scmp.eq.s32.totalorder %s21, 0
      %p178 = por %p176, %p177
      %p179 = scmp.ne.s32.totalorder %s167, %s168
      %p180 = scmp.eq.s32.totalorder %s22, 1
      %p181 = por %p179, %p180
      %p183 = scmp.ne.s32.totalorder %s168, %s182
      %p184 = scmp.eq.s32.totalorder %s22, 0
      %p185 = por %p183, %p184
      %s187 = sadd.s32 %s186, 1
      %p190 = scmp.eq.s32.totalorder %s16, 1
      %p191 = scmp.ne.s32.totalorder %s186, %s188
      %p192 = scmp.eq.s32.totalorder %s16, 0
      %p193 = por %p191, %p192
      %p194 = scmp.ne.s32.totalorder %s186, %s188
      %p195 = scmp.eq.s32.totalorder %s21, 1
      %p196 = por %p194, %p195
      %p197 = scmp.ne.s32.totalorder %s188, %s189
      %p198 = scmp.eq.s32.totalorder %s21, 0
      %p199 = por %p197, %p198
      %p200 = scmp.ne.s32.totalorder %s188, %s189
      %p201 = scmp.eq.s32.totalorder %s22, 1
      %p202 = por %p200, %p201
      %p204 = scmp.ne.s32.totalorder %s189, %s203
      %p205 = scmp.eq.s32.totalorder %s22, 0
      %p206 = por %p204, %p205
      %s208 = sadd.s32 %s207, 1
      %p211 = scmp.eq.s32.totalorder %s16, 1
      %p212 = scmp.ne.s32.totalorder %s207, %s209
      %p213 = scmp.eq.s32.totalorder %s16, 0
      %p214 = por %p212, %p213
      %p215 = scmp.ne.s32.totalorder %s207, %s209
      %p216 = scmp.eq.s32.totalorder %s21, 1
      %p217 = por %p215, %p216
      %p218 = scmp.ne.s32.totalorder %s209, %s210
      %p219 = scmp.eq.s32.totalorder %s21, 0
      %p220 = por %p218, %p219
      %p221 = scmp.ne.s32.totalorder %s209, %s210
      %p222 = scmp.eq.s32.totalorder %s22, 1
      %p223 = por %p221, %p222
      %p225 = scmp.ne.s32.totalorder %s210, %s224
      %p226 = scmp.eq.s32.totalorder %s22, 0
      %p227 = por %p225, %p226
      %s228 = ssub.s32 %s16, %s23
      %p229 = scmp.eq.s32.totalorder %s228, 0
      %s231 = sadd.s32 %s230, 1
      %s232 = scalar_select %p229, %s230, %s231
      %p235 = pneg %p229
      %p236 = scmp.eq.s32.totalorder %s16, 1
      %p237 = por %p235, %p236
      %p238 = scmp.ne.s32.totalorder %s230, %s233
      %p239 = scmp.eq.s32.totalorder %s16, 0
      %p240 = por %p238, %p239
      %p241 = scmp.ne.s32.totalorder %s230, %s233
      %p242 = scmp.eq.s32.totalorder %s21, 1
      %p243 = por %p241, %p242
      %p244 = scmp.ne.s32.totalorder %s233, %s234
      %p245 = scmp.eq.s32.totalorder %s21, 0
      %p246 = por %p244, %p245
      %p247 = scmp.ne.s32.totalorder %s233, %s234
      %p248 = scmp.eq.s32.totalorder %s22, 1
      %p249 = por %p247, %p248
      %p251 = scmp.ne.s32.totalorder %s234, %s250
      %p252 = scmp.eq.s32.totalorder %s22, 0
      %p253 = por %p251, %p252
      %p254 = scmp.le.s32.totalorder 1, %s16
      %p255 = scmp.lt.s32.totalorder %s16, 3
      %p256 = pnand %p254, %p255
      %p257 = pneg %p256
      // Predicated region
      $region9: #{tpu_custom_call.1} parent=5 // pred_check
        _
      $region10: #{tpu_custom_call.1} parent=5 // pred_check_branch
        %259 = sbr.rel (%p256) target = $region12
      $region11: #{tpu_custom_call.1} parent=5 // pred_region
        %s260 = ssub.s32 %s16, 1
        // Predicated region
        $region13: #{tpu_custom_call.1} parent=11 // pred_check
          %p261 = pneg %p115
        $region14: #{tpu_custom_call.1} parent=11 // pred_check_branch
          %263 = sbr.rel (%p261) target = $region16
        $region15: #{tpu_custom_call.1} parent=11 // pred_region
          _
        $region16: #{tpu_custom_call.1} parent=11 // pred_fallthru
          _
        // Predicated region
        $region17: #{tpu_custom_call.1} parent=11 // pred_check
          %p264 = pneg %p136
        $region18: #{tpu_custom_call.1} parent=11 // pred_check_branch
          %266 = sbr.rel (%p264) target = $region20
        $region19: #{tpu_custom_call.1} parent=11 // pred_region
          _
        $region20: #{tpu_custom_call.1} parent=11 // pred_fallthru
          _
        // Predicated region
        $region21: #{tpu_custom_call.1} parent=11 // pred_check
          %p267 = pneg %p157
        $region22: #{tpu_custom_call.1} parent=11 // pred_check_branch
          %269 = sbr.rel (%p267) target = $region24
        $region23: #{tpu_custom_call.1} parent=11 // pred_region
          _
        $region24: #{tpu_custom_call.1} parent=11 // pred_fallthru
          _
        // Predicated region
        $region25: #{tpu_custom_call.1} parent=11 // pred_check
          %p270 = pneg %p178
        $region26: #{tpu_custom_call.1} parent=11 // pred_check_branch
          %272 = sbr.rel (%p270) target = $region28
        $region27: #{tpu_custom_call.1} parent=11 // pred_region
          _
        $region28: #{tpu_custom_call.1} parent=11 // pred_fallthru
          _
        // Predicated region
        $region29: #{tpu_custom_call.1} parent=11 // pred_check
          %p273 = pneg %p199
        $region30: #{tpu_custom_call.1} parent=11 // pred_check_branch
          %275 = sbr.rel (%p273) target = $region32
        $region31: #{tpu_custom_call.1} parent=11 // pred_region
          %s277 = ssub.s32 6144, 6144
          %278 = vsyncadd [#allocation3], %s277
          %s279 = sshll.u32 [#allocation2], 4
          %s280 = int_to_ptr.vmem [resolvable:$true] %s279
          %285 = dma.hbm_to_vmem [thread:$0]  %s7, 6144, %s280, [#allocation3], 192, 192, 12
        $region32: #{tpu_custom_call.1} parent=11 // pred_fallthru
          _
        // Predicated region
        $region33: #{tpu_custom_call.1} parent=11 // pred_check
          %p286 = pneg %p220
        $region34: #{tpu_custom_call.1} parent=11 // pred_check_branch
          %288 = sbr.rel (%p286) target = $region36
        $region35: #{tpu_custom_call.1} parent=11 // pred_region
          _
        $region36: #{tpu_custom_call.1} parent=11 // pred_fallthru
          _
      $region12: #{tpu_custom_call.1} parent=5 // pred_fallthru
        _
      %p289 = scmp.lt.s32.totalorder %s16, 2
      // Predicated region
      $region37: #{tpu_custom_call.1} parent=5 // pred_check
        %p290 = pneg %p289
      $region38: #{tpu_custom_call.1} parent=5 // pred_check_branch
        %292 = sbr.rel (%p290) target = $region40
      $region39: #{tpu_custom_call.1} parent=5 // pred_region
        // Predicated region
        $region41: #{tpu_custom_call.1} parent=39 // pred_check
          %p293 = pneg %p36
        $region42: #{tpu_custom_call.1} parent=39 // pred_check_branch
          %295 = sbr.rel (%p293) target = $region44
        $region43: #{tpu_custom_call.1} parent=39 // pred_region
          %p296 = scmp.lt.s32.totalorder %s16, 1
          %s297 = scalar_select %p296, %s16, 1
          %s298 = smul.addr %s297, 16
          %s299 = smul.addr %s298, 8
          %s300 = scalar_lea.vmem %s0, %s299
        $region44: #{tpu_custom_call.1} parent=39 // pred_fallthru
          _
        // Predicated region
        $region45: #{tpu_custom_call.1} parent=39 // pred_check
          %p301 = pneg %p62
        $region46: #{tpu_custom_call.1} parent=39 // pred_check_branch
          %303 = sbr.rel (%p301) target = $region48
        $region47: #{tpu_custom_call.1} parent=39 // pred_region
          %p304 = scmp.lt.s32.totalorder %s16, 1
          %s305 = scalar_select %p304, %s16, 1
          %s306 = smul.addr %s305, 16
          %s307 = smul.addr %s306, 4
          %s308 = scalar_lea.vmem %s1, %s307
        $region48: #{tpu_custom_call.1} parent=39 // pred_fallthru
          _
        // Predicated region
        $region49: #{tpu_custom_call.1} parent=39 // pred_check
          %p309 = pneg %p88
        $region50: #{tpu_custom_call.1} parent=39 // pred_check_branch
          %311 = sbr.rel (%p309) target = $region52
        $region51: #{tpu_custom_call.1} parent=39 // pred_region
          %p312 = scmp.lt.s32.totalorder %s16, 1
          %s313 = scalar_select %p312, %s16, 1
          %s314 = smul.addr %s313, 2
          %s315 = smul.addr %s314, 4
          %s316 = scalar_lea.vmem %s2, %s315
        $region52: #{tpu_custom_call.1} parent=39 // pred_fallthru
          _
      $region40: #{tpu_custom_call.1} parent=5 // pred_fallthru
        _
      %p317 = scmp.le.s32.totalorder 1, %s16
      %p318 = scmp.lt.s32.totalorder %s16, 3
      %p319 = pnand %p317, %p318
      %p320 = pneg %p319
      // Predicated region
      $region53: #{tpu_custom_call.1} parent=5 // pred_check
        _
      $region54: #{tpu_custom_call.1} parent=5 // pred_check_branch
        %322 = sbr.rel (%p319) target = $region56
      $region55: #{tpu_custom_call.1} parent=5 // pred_region
        %s323 = ssub.s32 %s16, 1
        // Predicated region
        $region57: #{tpu_custom_call.1} parent=55 // pred_check
          %p324 = pneg %p199
        $region58: #{tpu_custom_call.1} parent=55 // pred_check_branch
          %326 = sbr.rel (%p324) target = $region60
        $region59: #{tpu_custom_call.1} parent=55 // pred_region
          %327 = dma.done [#allocation3], 6144
        $region60: #{tpu_custom_call.1} parent=55 // pred_fallthru
          _
        %p328 = scmp.lt.s32.totalorder %s21, 1
        %s329 = scalar_select %p328, %s21, 1
        %s330 = smul.addr %s329, 16
        %s331 = smul.addr %s330, 8
        %s332 = scalar_lea.vmem %s0, %s331
        %p333 = pneg %p42
        %p334 = pneg %p39
        %p335 = scmp.lt.s32.totalorder %s21, 1
        %s336 = scalar_select %p335, %s21, 1
        %s337 = smul.addr %s336, 16
        %s338 = smul.addr %s337, 4
        %s339 = scalar_lea.vmem %s1, %s338
        %p340 = pneg %p68
        %p341 = pneg %p65
        %p342 = scmp.lt.s32.totalorder %s21, 1
        %s343 = scalar_select %p342, %s21, 1
        %s344 = smul.addr %s343, 2
        %s345 = smul.addr %s344, 4
        %s346 = scalar_lea.vmem %s2, %s345
        %p347 = pneg %p94
        %p348 = pneg %p91
        %p349 = pneg %p115
        %p350 = pneg %p112
        %p351 = pneg %p136
        %p352 = pneg %p133
        %p353 = pneg %p157
        %p354 = pneg %p154
        %p355 = pneg %p178
        %p356 = pneg %p175
        %p357 = pneg %p199
        %p358 = pneg %p196
        %p359 = pneg %p220
        %p360 = pneg %p217
        %p361 = pneg %p246
        %p362 = pneg %p243
        %p363 = scmp.lt.s32.totalorder %s21, 1
        %s364 = scalar_select %p363, %s21, 1
        %s365 = smul.addr %s364, 2
        %s366 = smul.addr %s365, 8
        %s367 = scalar_lea.vmem %s9, %s366
        %p368 = scmp.lt.s32.totalorder %s21, 1
        %s369 = scalar_select %p368, %s21, 1
        %s370 = smul.addr %s369, 16
        %s371 = smul.addr %s370, 8
        %s372 = scalar_lea.vmem %s0, %s371
        %p373 = scmp.lt.s32.totalorder %s21, 1
        %s374 = scalar_select %p373, %s21, 1
        %s375 = smul.addr %s374, 16
        %s376 = smul.addr %s375, 4
        %s377 = scalar_lea.vmem %s1, %s376
        %p378 = scmp.lt.s32.totalorder %s21, 1
        %s379 = scalar_select %p378, %s21, 1
        %s380 = smul.addr %s379, 2
        %s381 = smul.addr %s380, 4
        %s382 = scalar_lea.vmem %s2, %s381
        %p383 = scmp.lt.s32.totalorder %s21, 1
        %s384 = scalar_select %p383, %s21, 1
        %s385 = smul.addr %s384, 2
        %s386 = smul.addr %s385, 8
        %s387 = scalar_lea.vmem %s9, %s386
        %v389 = vld [vmem:[%s372] sm:$0xff]
        %v390 = vld [vmem:[%s372 + $0x8] sm:$0xff]
        %v391 = vld [vmem:[%s372 + $0x10] sm:$0xff]
        %v392 = vld [vmem:[%s372 + $0x18] sm:$0xff]
        %v393 = vld [vmem:[%s372 + $0x20] sm:$0xff]
        %v394 = vld [vmem:[%s372 + $0x28] sm:$0xff]
        %v395 = vld [vmem:[%s372 + $0x30] sm:$0xff]
        %v396 = vld [vmem:[%s372 + $0x38] sm:$0xff]
        %v397 = vld [vmem:[%s372 + $0x40] sm:$0xff]
        %v398 = vld [vmem:[%s372 + $0x48] sm:$0xff]
        %v399 = vld [vmem:[%s372 + $0x50] sm:$0xff]
        %v400 = vld [vmem:[%s372 + $0x58] sm:$0xff]
        %v401 = vld [vmem:[%s372 + $0x60] sm:$0xff]
        %v402 = vld [vmem:[%s372 + $0x68] sm:$0xff]
        %v403 = vld [vmem:[%s372 + $0x70] sm:$0xff]
        %v404 = vld [vmem:[%s372 + $0x78] sm:$0xff]
        %v405 = vpack.c.bf16 %v390, %v389
        %v406 = vpack.c.bf16 %v392, %v391
        %v407 = vpack.c.bf16 %v394, %v393
        %v408 = vpack.c.bf16 %v396, %v395
        %v409 = vpack.c.bf16 %v398, %v397
        %v410 = vpack.c.bf16 %v400, %v399
        %v411 = vpack.c.bf16 %v402, %v401
        %v412 = vpack.c.bf16 %v404, %v403
        %v413 = vld [vmem:[%s377] sm:$0xf]
        %v414 = vld [vmem:[%s377 + $0x4] sm:$0xf]
        %v415 = vld [vmem:[%s377 + $0x8] sm:$0xf]
        %v416 = vld [vmem:[%s377 + $0xc] sm:$0xf]
        %v417 = vld [vmem:[%s377 + $0x10] sm:$0xf]
        %v418 = vld [vmem:[%s377 + $0x14] sm:$0xf]
        %v419 = vld [vmem:[%s377 + $0x18] sm:$0xf]
        %v420 = vld [vmem:[%s377 + $0x1c] sm:$0xf]
        %v421 = vld [vmem:[%s377 + $0x20] sm:$0xf]
        %v422 = vld [vmem:[%s377 + $0x24] sm:$0xf]
        %v423 = vld [vmem:[%s377 + $0x28] sm:$0xf]
        %v424 = vld [vmem:[%s377 + $0x2c] sm:$0xf]
        %v425 = vld [vmem:[%s377 + $0x30] sm:$0xf]
        %v426 = vld [vmem:[%s377 + $0x34] sm:$0xf]
        %v427 = vld [vmem:[%s377 + $0x38] sm:$0xf]
        %v428 = vld [vmem:[%s377 + $0x3c] sm:$0xf]
        %v445 = vunpack.c.l.b16 %v413
        %v446 = vunpack.c.l.b16 %v414
        %v447 = vunpack.c.l.b16 %v415
        %v448 = vunpack.c.l.b16 %v416
        %v449 = vunpack.c.l.b16 %v417
        %v450 = vunpack.c.l.b16 %v418
        %v451 = vunpack.c.l.b16 %v419
        %v452 = vunpack.c.l.b16 %v420
        %v453 = vunpack.c.l.b16 %v421
        %v454 = vunpack.c.l.b16 %v422
        %v455 = vunpack.c.l.b16 %v423
        %v456 = vunpack.c.l.b16 %v424
        %v457 = vunpack.c.l.b16 %v425
        %v458 = vunpack.c.l.b16 %v426
        %v459 = vunpack.c.l.b16 %v427
        %v460 = vunpack.c.l.b16 %v428
        %v461 = vpack.c.b16 %v446, %v445
        %v462 = vpack.c.b16 %v448, %v447
        %v463 = vpack.c.b16 %v450, %v449
        %v464 = vpack.c.b16 %v452, %v451
        %v465 = vpack.c.b16 %v454, %v453
        %v466 = vpack.c.b16 %v456, %v455
        %v467 = vpack.c.b16 %v458, %v457
        %v468 = vpack.c.b16 %v460, %v459
        %477 = vmatprep.subr.bf16.mxu0 0
        %478 = vmatpush1.bf16.msra.mxu0 %v405
        %479 = vmatprep.subr.bf16.mxu0 0
        %480 = vmatpush1.bf16.msra.mxu0 %v406
        %481 = vmatprep.subr.bf16.mxu0 0
        %482 = vmatpush1.bf16.msra.mxu0 %v407
        %483 = vmatprep.subr.bf16.mxu0 0
        %484 = vmatpush1.bf16.msra.mxu0 %v408
        %485 = vmatprep.subr.bf16.mxu0 0
        %486 = vmatpush1.bf16.msra.mxu0 %v409
        %487 = vmatprep.subr.bf16.mxu0 0
        %488 = vmatpush1.bf16.msra.mxu0 %v410
        %489 = vmatprep.subr.bf16.mxu0 0
        %490 = vmatpush1.bf16.msra.mxu0 %v411
        %491 = vmatprep.subr.bf16.mxu0 0
        %492 = vmatpush1.bf16.msra.mxu0 %v412
        %493 = vmatprep.subr.bf16.mxu0 0
        %494 = vmatpush1.bf16.msra.mxu0 0
        %495 = vmatprep.subr.bf16.mxu0 0
        %496 = vmatpush1.bf16.msra.mxu0 0
        %497 = vmatprep.subr.bf16.mxu0 0
        %498 = vmatpush1.bf16.msra.mxu0 0
        %499 = vmatprep.subr.bf16.mxu0 0
        %500 = vmatpush1.bf16.msra.mxu0 0
        %501 = vmatprep.subr.bf16.mxu0 0
        %502 = vmatpush1.bf16.msra.mxu0 0
        %503 = vmatprep.subr.bf16.mxu0 0
        %504 = vmatpush1.bf16.msra.mxu0 0
        %505 = vmatprep.subr.bf16.mxu0 0
        %506 = vmatpush1.bf16.msra.mxu0 0
        %507 = vmatprep.subr.bf16.mxu0 0
        %508 = vmatpush1.bf16.msra.mxu0 0
        %509 = vmatprep.mubr.bf16.mxu0 0
        %510 = vmatmul.mubr.bf16.gmra.mrb[0].mxu0 %v461
        %v511 = vpop.f32.mrb[0].mxu0
        %v512 = vadd.f32 0.0, %v511
        %v513 = vpop.f32.mrb[0].mxu0
        %v514 = vpop.f32.mrb[0].mxu0
        %v515 = vadd.f32 0.0, %v514
        %v516 = vpop.f32.mrb[0].mxu0
        %517 = vmatprep.mubr.bf16.mxu0 0
        %518 = vmatmul.mubr.bf16.gmra.mrb[0].mxu0 %v462
        %v519 = vpop.f32.mrb[0].mxu0
        %v520 = vadd.f32 0.0, %v519
        %v521 = vpop.f32.mrb[0].mxu0
        %v522 = vpop.f32.mrb[0].mxu0
        %v523 = vadd.f32 0.0, %v522
        %v524 = vpop.f32.mrb[0].mxu0
        %525 = vmatprep.mubr.bf16.mxu0 0
        %526 = vmatmul.mubr.bf16.gmra.mrb[0].mxu0 %v463
        %v527 = vpop.f32.mrb[0].mxu0
        %v528 = vadd.f32 0.0, %v527
        %v529 = vpop.f32.mrb[0].mxu0
        %v530 = vpop.f32.mrb[0].mxu0
        %v531 = vadd.f32 0.0, %v530
        %v532 = vpop.f32.mrb[0].mxu0
        %533 = vmatprep.mubr.bf16.mxu0 0
        %534 = vmatmul.mubr.bf16.gmra.mrb[0].mxu0 %v464
        %v535 = vpop.f32.mrb[0].mxu0
        %v536 = vadd.f32 0.0, %v535
        %v537 = vpop.f32.mrb[0].mxu0
        %v538 = vpop.f32.mrb[0].mxu0
        %v539 = vadd.f32 0.0, %v538
        %v540 = vpop.f32.mrb[0].mxu0
        %541 = vmatprep.mubr.bf16.mxu0 0
        %542 = vmatmul.mubr.bf16.gmra.mrb[0].mxu0 %v465
        %v543 = vpop.f32.mrb[0].mxu0
        %v544 = vadd.f32 0.0, %v543
        %v545 = vpop.f32.mrb[0].mxu0
        %v546 = vpop.f32.mrb[0].mxu0
        %v547 = vadd.f32 0.0, %v546
        %v548 = vpop.f32.mrb[0].mxu0
        %549 = vmatprep.mubr.bf16.mxu0 0
        %550 = vmatmul.mubr.bf16.gmra.mrb[0].mxu0 %v466
        %v551 = vpop.f32.mrb[0].mxu0
        %v552 = vadd.f32 0.0, %v551
        %v553 = vpop.f32.mrb[0].mxu0
        %v554 = vpop.f32.mrb[0].mxu0
        %v555 = vadd.f32 0.0, %v554
        %v556 = vpop.f32.mrb[0].mxu0
        %557 = vmatprep.mubr.bf16.mxu0 0
        %558 = vmatmul.mubr.bf16.gmra.mrb[0].mxu0 %v467
        %v559 = vpop.f32.mrb[0].mxu0
        %v560 = vadd.f32 0.0, %v559
        %v561 = vpop.f32.mrb[0].mxu0
        %v562 = vpop.f32.mrb[0].mxu0
        %v563 = vadd.f32 0.0, %v562
        %v564 = vpop.f32.mrb[0].mxu0
        %565 = vmatprep.mubr.bf16.mxu0 0
        %566 = vmatmul.mubr.bf16.gmra.mrb[0].mxu0 %v468
        %v567 = vpop.f32.mrb[0].mxu0
        %v568 = vadd.f32 0.0, %v567
        %v569 = vpop.f32.mrb[0].mxu0
        %v570 = vpop.f32.mrb[0].mxu0
        %v571 = vadd.f32 0.0, %v570
        %v572 = vpop.f32.mrb[0].mxu0
        %573 = vdwg.mxu0
        %v574 = vmul.f32 %v512, 0.70710677
        %v575 = vmul.f32 %v515, 0.70710677
        %v576 = vmul.f32 %v520, 0.70710677
        %v577 = vmul.f32 %v523, 0.70710677
        %v578 = vmul.f32 %v528, 0.70710677
        %v579 = vmul.f32 %v531, 0.70710677
        %v580 = vmul.f32 %v536, 0.70710677
        %v581 = vmul.f32 %v539, 0.70710677
        %v582 = vmul.f32 %v544, 0.70710677
        %v583 = vmul.f32 %v547, 0.70710677
        %v584 = vmul.f32 %v552, 0.70710677
        %v585 = vmul.f32 %v555, 0.70710677
        %v586 = vmul.f32 %v560, 0.70710677
        %v587 = vmul.f32 %v563, 0.70710677
        %v588 = vmul.f32 %v568, 0.70710677
        %v589 = vmul.f32 %v571, 0.70710677
        %v590 = vld [vmem:[%s3] sm:$0xff]
        %v591 = vld [vmem:[%s3 + $0x8] sm:$0xff]
        %v594 = vunpack.c.l.b16 %v590
        %v595 = vunpack.c.h.b16 %v590
        %v596 = vunpack.c.l.b16 %v591
        %v597 = vunpack.c.h.b16 %v591
        %v598 = vpack.c.b16 %v596, %v594
        %v599 = vpack.c.b16 %v597, %v595
        %vm602 = vcmask 130048
        %v604 = vsel %vm602, %v405, 0
        %v607 = vsel %vm602, %v406, 0
        %v610 = vsel %vm602, %v407, 0
        %v613 = vsel %vm602, %v408, 0
        %v616 = vsel %vm602, %v409, 0
        %v619 = vsel %vm602, %v410, 0
        %v622 = vsel %vm602, %v411, 0
        %v625 = vsel %vm602, %v412, 0
        %627 = vmatprep.subr.bf16.mxu0 %v599
        %628 = vmatpush1.bf16.msra.mxu0 %v598
        %629 = vmatprep.subr.bf16.mxu0 0
        %630 = vmatpush1.bf16.msra.mxu0 0
        %631 = vmatprep.subr.bf16.mxu0 0
        %632 = vmatpush1.bf16.msra.mxu0 0
        %633 = vmatprep.subr.bf16.mxu0 0
        %634 = vmatpush1.bf16.msra.mxu0 0
        %635 = vmatprep.subr.bf16.mxu0 0
        %636 = vmatpush1.bf16.msra.mxu0 0
        %637 = vmatprep.subr.bf16.mxu0 0
        %638 = vmatpush1.bf16.msra.mxu0 0
        %639 = vmatprep.subr.bf16.mxu0 0
        %640 = vmatpush1.bf16.msra.mxu0 0
        %641 = vmatprep.subr.bf16.mxu0 0
        %642 = vmatpush1.bf16.msra.mxu0 0
        %643 = vmatprep.subr.bf16.mxu0 0
        %644 = vmatpush1.bf16.msra.mxu0 0
        %645 = vmatprep.subr.bf16.mxu0 0
        %646 = vmatpush1.bf16.msra.mxu0 0
        %647 = vmatprep.subr.bf16.mxu0 0
        %648 = vmatpush1.bf16.msra.mxu0 0
        %649 = vmatprep.subr.bf16.mxu0 0
        %650 = vmatpush1.bf16.msra.mxu0 0
        %651 = vmatprep.subr.bf16.mxu0 0
        %652 = vmatpush1.bf16.msra.mxu0 0
        %653 = vmatprep.subr.bf16.mxu0 0
        %654 = vmatpush1.bf16.msra.mxu0 0
        %655 = vmatprep.subr.bf16.mxu0 0
        %656 = vmatpush1.bf16.msra.mxu0 0
        %657 = vmatprep.subr.bf16.mxu0 0
        %658 = vmatpush1.bf16.msra.mxu0 0
        %659 = vmatprep.mubr.bf16.mxu0 0
        %660 = vmatmul.mubr.bf16.gmra.mrb[0].mxu0 %v604
        %v661 = vpop.f32.mrb[0].mxu0
        %v662 = vadd.f32 0.0, %v661
        %v663 = vpop.f32.mrb[0].mxu0
        %v664 = vadd.f32 0.0, %v663
        %v665 = vpop.f32.mrb[0].mxu0
        %v666 = vadd.f32 0.0, %v665
        %v667 = vpop.f32.mrb[0].mxu0
        %v668 = vadd.f32 0.0, %v667
        %669 = vmatprep.mubr.bf16.mxu0 0
        %670 = vmatmul.mubr.bf16.gmra.mrb[0].mxu0 %v607
        %v671 = vpop.f32.mrb[0].mxu0
        %v672 = vadd.f32 0.0, %v671
        %v673 = vpop.f32.mrb[0].mxu0
        %v674 = vadd.f32 0.0, %v673
        %v675 = vpop.f32.mrb[0].mxu0
        %v676 = vadd.f32 0.0, %v675
        %v677 = vpop.f32.mrb[0].mxu0
        %v678 = vadd.f32 0.0, %v677
        %679 = vmatprep.mubr.bf16.mxu0 0
        %680 = vmatmul.mubr.bf16.gmra.mrb[0].mxu0 %v610
        %v681 = vpop.f32.mrb[0].mxu0
        %v682 = vadd.f32 0.0, %v681
        %v683 = vpop.f32.mrb[0].mxu0
        %v684 = vadd.f32 0.0, %v683
        %v685 = vpop.f32.mrb[0].mxu0
        %v686 = vadd.f32 0.0, %v685
        %v687 = vpop.f32.mrb[0].mxu0
        %v688 = vadd.f32 0.0, %v687
        %689 = vmatprep.mubr.bf16.mxu0 0
        %690 = vmatmul.mubr.bf16.gmra.mrb[0].mxu0 %v613
        %v691 = vpop.f32.mrb[0].mxu0
        %v692 = vadd.f32 0.0, %v691
        %v693 = vpop.f32.mrb[0].mxu0
        %v694 = vadd.f32 0.0, %v693
        %v695 = vpop.f32.mrb[0].mxu0
        %v696 = vadd.f32 0.0, %v695
        %v697 = vpop.f32.mrb[0].mxu0
        %v698 = vadd.f32 0.0, %v697
        %699 = vmatprep.mubr.bf16.mxu0 0
        %700 = vmatmul.mubr.bf16.gmra.mrb[0].mxu0 %v616
        %v701 = vpop.f32.mrb[0].mxu0
        %v702 = vadd.f32 0.0, %v701
        %v703 = vpop.f32.mrb[0].mxu0
        %v704 = vadd.f32 0.0, %v703
        %v705 = vpop.f32.mrb[0].mxu0
        %v706 = vadd.f32 0.0, %v705
        %v707 = vpop.f32.mrb[0].mxu0
        %v708 = vadd.f32 0.0, %v707
        %709 = vmatprep.mubr.bf16.mxu0 0
        %710 = vmatmul.mubr.bf16.gmra.mrb[0].mxu0 %v619
        %v711 = vpop.f32.mrb[0].mxu0
        %v712 = vadd.f32 0.0, %v711
        %v713 = vpop.f32.mrb[0].mxu0
        %v714 = vadd.f32 0.0, %v713
        %v715 = vpop.f32.mrb[0].mxu0
        %v716 = vadd.f32 0.0, %v715
        %v717 = vpop.f32.mrb[0].mxu0
        %v718 = vadd.f32 0.0, %v717
        %719 = vmatprep.mubr.bf16.mxu0 0
        %720 = vmatmul.mubr.bf16.gmra.mrb[0].mxu0 %v622
        %v721 = vpop.f32.mrb[0].mxu0
        %v722 = vadd.f32 0.0, %v721
        %v723 = vpop.f32.mrb[0].mxu0
        %v724 = vadd.f32 0.0, %v723
        %v725 = vpop.f32.mrb[0].mxu0
        %v726 = vadd.f32 0.0, %v725
        %v727 = vpop.f32.mrb[0].mxu0
        %v728 = vadd.f32 0.0, %v727
        %729 = vmatprep.mubr.bf16.mxu0 0
        %730 = vmatmul.mubr.bf16.gmra.mrb[0].mxu0 %v625
        %v731 = vpop.f32.mrb[0].mxu0
        %v732 = vadd.f32 0.0, %v731
        %v733 = vpop.f32.mrb[0].mxu0
        %v734 = vadd.f32 0.0, %v733
        %v735 = vpop.f32.mrb[0].mxu0
        %v736 = vadd.f32 0.0, %v735
        %v737 = vpop.f32.mrb[0].mxu0
        %v738 = vadd.f32 0.0, %v737
        %739 = vdwg.mxu0
        %v740 = vpack.c.bf16 %v575, %v574
        %v741 = vpack.c.bf16 %v577, %v576
        %v742 = vpack.c.bf16 %v579, %v578
        %v743 = vpack.c.bf16 %v581, %v580
        %v744 = vpack.c.bf16 %v583, %v582
        %v745 = vpack.c.bf16 %v585, %v584
        %v746 = vpack.c.bf16 %v587, %v586
        %v747 = vpack.c.bf16 %v589, %v588
        %v748 = vld [vmem:[%s4] sm:$0xff]
        %v749 = vld [vmem:[%s4 + $0x8] sm:$0xff]
        %v752 = vunpack.c.l.b16 %v748
        %v753 = vunpack.c.h.b16 %v748
        %v754 = vunpack.c.l.b16 %v749
        %v755 = vunpack.c.h.b16 %v749
        %v756 = vpack.c.b16 %v754, %v752
        %v757 = vpack.c.b16 %v755, %v753
        %v761 = vsel %vm602, %v740, 0
        %v764 = vsel %vm602, %v741, 0
        %v767 = vsel %vm602, %v742, 0
        %v770 = vsel %vm602, %v743, 0
        %v773 = vsel %vm602, %v744, 0
        %v776 = vsel %vm602, %v745, 0
        %v779 = vsel %vm602, %v746, 0
        %v782 = vsel %vm602, %v747, 0
        %784 = vmatprep.subr.bf16.mxu0 %v757
        %785 = vmatpush1.bf16.msra.mxu0 %v756
        %786 = vmatprep.subr.bf16.mxu0 0
        %787 = vmatpush1.bf16.msra.mxu0 0
        %788 = vmatprep.subr.bf16.mxu0 0
        %789 = vmatpush1.bf16.msra.mxu0 0
        %790 = vmatprep.subr.bf16.mxu0 0
        %791 = vmatpush1.bf16.msra.mxu0 0
        %792 = vmatprep.subr.bf16.mxu0 0
        %793 = vmatpush1.bf16.msra.mxu0 0
        %794 = vmatprep.subr.bf16.mxu0 0
        %795 = vmatpush1.bf16.msra.mxu0 0
        %796 = vmatprep.subr.bf16.mxu0 0
        %797 = vmatpush1.bf16.msra.mxu0 0
        %798 = vmatprep.subr.bf16.mxu0 0
        %799 = vmatpush1.bf16.msra.mxu0 0
        %800 = vmatprep.subr.bf16.mxu0 0
        %801 = vmatpush1.bf16.msra.mxu0 0
        %802 = vmatprep.subr.bf16.mxu0 0
        %803 = vmatpush1.bf16.msra.mxu0 0
        %804 = vmatprep.subr.bf16.mxu0 0
        %805 = vmatpush1.bf16.msra.mxu0 0
        %806 = vmatprep.subr.bf16.mxu0 0
        %807 = vmatpush1.bf16.msra.mxu0 0
        %808 = vmatprep.subr.bf16.mxu0 0
        %809 = vmatpush1.bf16.msra.mxu0 0
        %810 = vmatprep.subr.bf16.mxu0 0
        %811 = vmatpush1.bf16.msra.mxu0 0
        %812 = vmatprep.subr.bf16.mxu0 0
        %813 = vmatpush1.bf16.msra.mxu0 0
        %814 = vmatprep.subr.bf16.mxu0 0
        %815 = vmatpush1.bf16.msra.mxu0 0
        %816 = vmatprep.mubr.bf16.mxu0 0
        %817 = vmatmul.mubr.bf16.gmra.mrb[0].mxu0 %v761
        %v818 = vpop.f32.mrb[0].mxu0
        %v819 = vadd.f32 0.0, %v818
        %v820 = vpop.f32.mrb[0].mxu0
        %v821 = vadd.f32 0.0, %v820
        %v822 = vpop.f32.mrb[0].mxu0
        %v823 = vadd.f32 0.0, %v822
        %v824 = vpop.f32.mrb[0].mxu0
        %v825 = vadd.f32 0.0, %v824
        %826 = vmatprep.mubr.bf16.mxu0 0
        %827 = vmatmul.mubr.bf16.gmra.mrb[0].mxu0 %v764
        %v828 = vpop.f32.mrb[0].mxu0
        %v829 = vadd.f32 0.0, %v828
        %v830 = vpop.f32.mrb[0].mxu0
        %v831 = vadd.f32 0.0, %v830
        %v832 = vpop.f32.mrb[0].mxu0
        %v833 = vadd.f32 0.0, %v832
        %v834 = vpop.f32.mrb[0].mxu0
        %v835 = vadd.f32 0.0, %v834
        %836 = vmatprep.mubr.bf16.mxu0 0
        %837 = vmatmul.mubr.bf16.gmra.mrb[0].mxu0 %v767
        %v838 = vpop.f32.mrb[0].mxu0
        %v839 = vadd.f32 0.0, %v838
        %v840 = vpop.f32.mrb[0].mxu0
        %v841 = vadd.f32 0.0, %v840
        %v842 = vpop.f32.mrb[0].mxu0
        %v843 = vadd.f32 0.0, %v842
        %v844 = vpop.f32.mrb[0].mxu0
        %v845 = vadd.f32 0.0, %v844
        %846 = vmatprep.mubr.bf16.mxu0 0
        %847 = vmatmul.mubr.bf16.gmra.mrb[0].mxu0 %v770
        %v848 = vpop.f32.mrb[0].mxu0
        %v849 = vadd.f32 0.0, %v848
        %v850 = vpop.f32.mrb[0].mxu0
        %v851 = vadd.f32 0.0, %v850
        %v852 = vpop.f32.mrb[0].mxu0
        %v853 = vadd.f32 0.0, %v852
        %v854 = vpop.f32.mrb[0].mxu0
        %v855 = vadd.f32 0.0, %v854
        %856 = vmatprep.mubr.bf16.mxu0 0
        %857 = vmatmul.mubr.bf16.gmra.mrb[0].mxu0 %v773
        %v858 = vpop.f32.mrb[0].mxu0
        %v859 = vadd.f32 0.0, %v858
        %v860 = vpop.f32.mrb[0].mxu0
        %v861 = vadd.f32 0.0, %v860
        %v862 = vpop.f32.mrb[0].mxu0
        %v863 = vadd.f32 0.0, %v862
        %v864 = vpop.f32.mrb[0].mxu0
        %v865 = vadd.f32 0.0, %v864
        %866 = vmatprep.mubr.bf16.mxu0 0
        %867 = vmatmul.mubr.bf16.gmra.mrb[0].mxu0 %v776
        %v868 = vpop.f32.mrb[0].mxu0
        %v869 = vadd.f32 0.0, %v868
        %v870 = vpop.f32.mrb[0].mxu0
        %v871 = vadd.f32 0.0, %v870
        %v872 = vpop.f32.mrb[0].mxu0
        %v873 = vadd.f32 0.0, %v872
        %v874 = vpop.f32.mrb[0].mxu0
        %v875 = vadd.f32 0.0, %v874
        %876 = vmatprep.mubr.bf16.mxu0 0
        %877 = vmatmul.mubr.bf16.gmra.mrb[0].mxu0 %v779
        %v878 = vpop.f32.mrb[0].mxu0
        %v879 = vadd.f32 0.0, %v878
        %v880 = vpop.f32.mrb[0].mxu0
        %v881 = vadd.f32 0.0, %v880
        %v882 = vpop.f32.mrb[0].mxu0
        %v883 = vadd.f32 0.0, %v882
        %v884 = vpop.f32.mrb[0].mxu0
        %v885 = vadd.f32 0.0, %v884
        %886 = vmatprep.mubr.bf16.mxu0 0
        %887 = vmatmul.mubr.bf16.gmra.mrb[0].mxu0 %v782
        %v888 = vpop.f32.mrb[0].mxu0
        %v889 = vadd.f32 0.0, %v888
        %v890 = vpop.f32.mrb[0].mxu0
        %v891 = vadd.f32 0.0, %v890
        %v892 = vpop.f32.mrb[0].mxu0
        %v893 = vadd.f32 0.0, %v892
        %v894 = vpop.f32.mrb[0].mxu0
        %v895 = vadd.f32 0.0, %v894
        %896 = vdwg.mxu0
        %v897 = vmul.f32 %v662, %v819
        %v898 = vmul.f32 %v664, %v821
        %v899 = vmul.f32 %v666, %v823
        %v900 = vmul.f32 %v668, %v825
        %v901 = vmul.f32 %v672, %v829
        %v902 = vmul.f32 %v674, %v831
        %v903 = vmul.f32 %v676, %v833
        %v904 = vmul.f32 %v678, %v835
        %v905 = vmul.f32 %v682, %v839
        %v906 = vmul.f32 %v684, %v841
        %v907 = vmul.f32 %v686, %v843
        %v908 = vmul.f32 %v688, %v845
        %v909 = vmul.f32 %v692, %v849
        %v910 = vmul.f32 %v694, %v851
        %v911 = vmul.f32 %v696, %v853
        %v912 = vmul.f32 %v698, %v855
        %v913 = vmul.f32 %v702, %v859
        %v914 = vmul.f32 %v704, %v861
        %v915 = vmul.f32 %v706, %v863
        %v916 = vmul.f32 %v708, %v865
        %v917 = vmul.f32 %v712, %v869
        %v918 = vmul.f32 %v714, %v871
        %v919 = vmul.f32 %v716, %v873
        %v920 = vmul.f32 %v718, %v875
        %v921 = vmul.f32 %v722, %v879
        %v922 = vmul.f32 %v724, %v881
        %v923 = vmul.f32 %v726, %v883
        %v924 = vmul.f32 %v728, %v885
        %v925 = vmul.f32 %v732, %v889
        %v926 = vmul.f32 %v734, %v891
        %v927 = vmul.f32 %v736, %v893
        %v928 = vmul.f32 %v738, %v895
        %v929 = vpack.c.bf16 %v899, %v897
        %v930 = vpack.c.bf16 %v900, %v898
        %v931 = vpack.c.bf16 %v903, %v901
        %v932 = vpack.c.bf16 %v904, %v902
        %v933 = vpack.c.bf16 %v907, %v905
        %v934 = vpack.c.bf16 %v908, %v906
        %v935 = vpack.c.bf16 %v911, %v909
        %v936 = vpack.c.bf16 %v912, %v910
        %v937 = vpack.c.bf16 %v915, %v913
        %v938 = vpack.c.bf16 %v916, %v914
        %v939 = vpack.c.bf16 %v919, %v917
        %v940 = vpack.c.bf16 %v920, %v918
        %v941 = vpack.c.bf16 %v923, %v921
        %v942 = vpack.c.bf16 %v924, %v922
        %v943 = vpack.c.bf16 %v927, %v925
        %v944 = vpack.c.bf16 %v928, %v926
        %v945 = vld [vmem:[#allocation2] sm:$0xff]
        %v946 = vld [vmem:[#allocation2 + $0x8] sm:$0xf]
        %v947 = vld [vmem:[#allocation2 + $0xc] sm:$0xff]
        %v948 = vld [vmem:[#allocation2 + $0x14] sm:$0xf]
        %v949 = vld [vmem:[#allocation2 + $0x18] sm:$0xff]
        %v950 = vld [vmem:[#allocation2 + $0x20] sm:$0xf]
        %v951 = vld [vmem:[#allocation2 + $0x24] sm:$0xff]
        %v952 = vld [vmem:[#allocation2 + $0x2c] sm:$0xf]
        %v953 = vld [vmem:[#allocation2 + $0x30] sm:$0xff]
        %v954 = vld [vmem:[#allocation2 + $0x38] sm:$0xf]
        %v955 = vld [vmem:[#allocation2 + $0x3c] sm:$0xff]
        %v956 = vld [vmem:[#allocation2 + $0x44] sm:$0xf]
        %v957 = vld [vmem:[#allocation2 + $0x48] sm:$0xff]
        %v958 = vld [vmem:[#allocation2 + $0x50] sm:$0xf]
        %v959 = vld [vmem:[#allocation2 + $0x54] sm:$0xff]
        %v960 = vld [vmem:[#allocation2 + $0x5c] sm:$0xf]
        %v961 = vld [vmem:[#allocation2 + $0x60] sm:$0xff]
        %v962 = vld [vmem:[#allocation2 + $0x68] sm:$0xf]
        %v963 = vld [vmem:[#allocation2 + $0x6c] sm:$0xff]
        %v964 = vld [vmem:[#allocation2 + $0x74] sm:$0xf]
        %v965 = vld [vmem:[#allocation2 + $0x78] sm:$0xff]
        %v966 = vld [vmem:[#allocation2 + $0x80] sm:$0xf]
        %v967 = vld [vmem:[#allocation2 + $0x84] sm:$0xff]
        %v968 = vld [vmem:[#allocation2 + $0x8c] sm:$0xf]
        %v969 = vld [vmem:[#allocation2 + $0x90] sm:$0xff]
        %v970 = vld [vmem:[#allocation2 + $0x98] sm:$0xf]
        %v971 = vld [vmem:[#allocation2 + $0x9c] sm:$0xff]
        %v972 = vld [vmem:[#allocation2 + $0xa4] sm:$0xf]
        %v973 = vld [vmem:[#allocation2 + $0xa8] sm:$0xff]
        %v974 = vld [vmem:[#allocation2 + $0xb0] sm:$0xf]
        %v975 = vld [vmem:[#allocation2 + $0xb4] sm:$0xff]
        %v976 = vld [vmem:[#allocation2 + $0xbc] sm:$0xf]
        %v977 = vld [vmem:[#allocation2 + $0xc0] sm:$0xff]
        %v978 = vld [vmem:[#allocation2 + $0xc8] sm:$0xf]
        %v979 = vld [vmem:[#allocation2 + $0xcc] sm:$0xff]
        %v980 = vld [vmem:[#allocation2 + $0xd4] sm:$0xf]
        %v981 = vld [vmem:[#allocation2 + $0xd8] sm:$0xff]
        %v982 = vld [vmem:[#allocation2 + $0xe0] sm:$0xf]
        %v983 = vld [vmem:[#allocation2 + $0xe4] sm:$0xff]
        %v984 = vld [vmem:[#allocation2 + $0xec] sm:$0xf]
        %v985 = vld [vmem:[#allocation2 + $0xf0] sm:$0xff]
        %v986 = vld [vmem:[#allocation2 + $0xf8] sm:$0xf]
        %v987 = vld [vmem:[#allocation2 + $0xfc] sm:$0xff]
        %v988 = vld [vmem:[#allocation2 + $0x104] sm:$0xf]
        %v989 = vld [vmem:[#allocation2 + $0x108] sm:$0xff]
        %v990 = vld [vmem:[#allocation2 + $0x110] sm:$0xf]
        %v991 = vld [vmem:[#allocation2 + $0x114] sm:$0xff]
        %v992 = vld [vmem:[#allocation2 + $0x11c] sm:$0xf]
        %v993 = vld [vmem:[#allocation2 + $0x120] sm:$0xff]
        %v994 = vld [vmem:[#allocation2 + $0x128] sm:$0xf]
        %v995 = vld [vmem:[#allocation2 + $0x12c] sm:$0xff]
        %v996 = vld [vmem:[#allocation2 + $0x134] sm:$0xf]
        %v997 = vld [vmem:[#allocation2 + $0x138] sm:$0xff]
        %v998 = vld [vmem:[#allocation2 + $0x140] sm:$0xf]
        %v999 = vld [vmem:[#allocation2 + $0x144] sm:$0xff]
        %v1000 = vld [vmem:[#allocation2 + $0x14c] sm:$0xf]
        %v1001 = vld [vmem:[#allocation2 + $0x150] sm:$0xff]
        %v1002 = vld [vmem:[#allocation2 + $0x158] sm:$0xf]
        %v1003 = vld [vmem:[#allocation2 + $0x15c] sm:$0xff]
        %v1004 = vld [vmem:[#allocation2 + $0x164] sm:$0xf]
        %v1005 = vld [vmem:[#allocation2 + $0x168] sm:$0xff]
        %v1006 = vld [vmem:[#allocation2 + $0x170] sm:$0xf]
        %v1007 = vld [vmem:[#allocation2 + $0x174] sm:$0xff]
        %v1008 = vld [vmem:[#allocation2 + $0x17c] sm:$0xf]
        %v1073 = vunpack.c.l.b16 %v945
        %v1074 = vunpack.c.h.b16 %v945
        %v1075 = vunpack.c.l.b16 %v946
        %v1076 = vunpack.c.l.b16 %v947
        %v1077 = vunpack.c.h.b16 %v947
        %v1078 = vunpack.c.l.b16 %v948
        %v1079 = vunpack.c.l.b16 %v949
        %v1080 = vunpack.c.h.b16 %v949
        %v1081 = vunpack.c.l.b16 %v950
        %v1082 = vunpack.c.l.b16 %v951
        %v1083 = vunpack.c.h.b16 %v951
        %v1084 = vunpack.c.l.b16 %v952
        %v1085 = vunpack.c.l.b16 %v953
        %v1086 = vunpack.c.h.b16 %v953
        %v1087 = vunpack.c.l.b16 %v954
        %v1088 = vunpack.c.l.b16 %v955
        %v1089 = vunpack.c.h.b16 %v955
        %v1090 = vunpack.c.l.b16 %v956
        %v1091 = vunpack.c.l.b16 %v957
        %v1092 = vunpack.c.h.b16 %v957
        %v1093 = vunpack.c.l.b16 %v958
        %v1094 = vunpack.c.l.b16 %v959
        %v1095 = vunpack.c.h.b16 %v959
        %v1096 = vunpack.c.l.b16 %v960
        %v1097 = vunpack.c.l.b16 %v961
        %v1098 = vunpack.c.h.b16 %v961
        %v1099 = vunpack.c.l.b16 %v962
        %v1100 = vunpack.c.l.b16 %v963
        %v1101 = vunpack.c.h.b16 %v963
        %v1102 = vunpack.c.l.b16 %v964
        %v1103 = vunpack.c.l.b16 %v965
        %v1104 = vunpack.c.h.b16 %v965
        %v1105 = vunpack.c.l.b16 %v966
        %v1106 = vunpack.c.l.b16 %v967
        %v1107 = vunpack.c.h.b16 %v967
        %v1108 = vunpack.c.l.b16 %v968
        %v1109 = vunpack.c.l.b16 %v969
        %v1110 = vunpack.c.h.b16 %v969
        %v1111 = vunpack.c.l.b16 %v970
        %v1112 = vunpack.c.l.b16 %v971
        %v1113 = vunpack.c.h.b16 %v971
        %v1114 = vunpack.c.l.b16 %v972
        %v1115 = vunpack.c.l.b16 %v973
        %v1116 = vunpack.c.h.b16 %v973
        %v1117 = vunpack.c.l.b16 %v974
        %v1118 = vunpack.c.l.b16 %v975
        %v1119 = vunpack.c.h.b16 %v975
        %v1120 = vunpack.c.l.b16 %v976
        %v1121 = vunpack.c.l.b16 %v977
        %v1122 = vunpack.c.h.b16 %v977
        %v1123 = vunpack.c.l.b16 %v978
        %v1124 = vunpack.c.l.b16 %v979
        %v1125 = vunpack.c.h.b16 %v979
        %v1126 = vunpack.c.l.b16 %v980
        %v1127 = vunpack.c.l.b16 %v981
        %v1128 = vunpack.c.h.b16 %v981
        %v1129 = vunpack.c.l.b16 %v982
        %v1130 = vunpack.c.l.b16 %v983
        %v1131 = vunpack.c.h.b16 %v983
        %v1132 = vunpack.c.l.b16 %v984
        %v1133 = vunpack.c.l.b16 %v985
        %v1134 = vunpack.c.h.b16 %v985
        %v1135 = vunpack.c.l.b16 %v986
        %v1136 = vunpack.c.l.b16 %v987
        %v1137 = vunpack.c.h.b16 %v987
        %v1138 = vunpack.c.l.b16 %v988
        %v1139 = vunpack.c.l.b16 %v989
        %v1140 = vunpack.c.h.b16 %v989
        %v1141 = vunpack.c.l.b16 %v990
        %v1142 = vunpack.c.l.b16 %v991
        %v1143 = vunpack.c.h.b16 %v991
        %v1144 = vunpack.c.l.b16 %v992
        %v1145 = vunpack.c.l.b16 %v993
        %v1146 = vunpack.c.h.b16 %v993
        %v1147 = vunpack.c.l.b16 %v994
        %v1148 = vunpack.c.l.b16 %v995
        %v1149 = vunpack.c.h.b16 %v995
        %v1150 = vunpack.c.l.b16 %v996
        %v1151 = vunpack.c.l.b16 %v997
        %v1152 = vunpack.c.h.b16 %v997
        %v1153 = vunpack.c.l.b16 %v998
        %v1154 = vunpack.c.l.b16 %v999
        %v1155 = vunpack.c.h.b16 %v999
        %v1156 = vunpack.c.l.b16 %v1000
        %v1157 = vunpack.c.l.b16 %v1001
        %v1158 = vunpack.c.h.b16 %v1001
        %v1159 = vunpack.c.l.b16 %v1002
        %v1160 = vunpack.c.l.b16 %v1003
        %v1161 = vunpack.c.h.b16 %v1003
        %v1162 = vunpack.c.l.b16 %v1004
        %v1163 = vunpack.c.l.b16 %v1005
        %v1164 = vunpack.c.h.b16 %v1005
        %v1165 = vunpack.c.l.b16 %v1006
        %v1166 = vunpack.c.l.b16 %v1007
        %v1167 = vunpack.c.h.b16 %v1007
        %v1168 = vunpack.c.l.b16 %v1008
        %v1169 = vpack.c.b16 %v1076, %v1073
        %v1170 = vpack.c.b16 %v1077, %v1074
        %v1171 = vpack.c.b16 %v1078, %v1075
        %v1172 = vpack.c.b16 %v1082, %v1079
        %v1173 = vpack.c.b16 %v1083, %v1080
        %v1174 = vpack.c.b16 %v1084, %v1081
        %v1175 = vpack.c.b16 %v1088, %v1085
        %v1176 = vpack.c.b16 %v1089, %v1086
        %v1177 = vpack.c.b16 %v1090, %v1087
        %v1178 = vpack.c.b16 %v1094, %v1091
        %v1179 = vpack.c.b16 %v1095, %v1092
        %v1180 = vpack.c.b16 %v1096, %v1093
        %v1181 = vpack.c.b16 %v1100, %v1097
        %v1182 = vpack.c.b16 %v1101, %v1098
        %v1183 = vpack.c.b16 %v1102, %v1099
        %v1184 = vpack.c.b16 %v1106, %v1103
        %v1185 = vpack.c.b16 %v1107, %v1104
        %v1186 = vpack.c.b16 %v1108, %v1105
        %v1187 = vpack.c.b16 %v1112, %v1109
        %v1188 = vpack.c.b16 %v1113, %v1110
        %v1189 = vpack.c.b16 %v1114, %v1111
        %v1190 = vpack.c.b16 %v1118, %v1115
        %v1191 = vpack.c.b16 %v1119, %v1116
        %v1192 = vpack.c.b16 %v1120, %v1117
        %v1193 = vpack.c.b16 %v1124, %v1121
        %v1194 = vpack.c.b16 %v1125, %v1122
        %v1195 = vpack.c.b16 %v1126, %v1123
        %v1196 = vpack.c.b16 %v1130, %v1127
        %v1197 = vpack.c.b16 %v1131, %v1128
        %v1198 = vpack.c.b16 %v1132, %v1129
        %v1199 = vpack.c.b16 %v1136, %v1133
        %v1200 = vpack.c.b16 %v1137, %v1134
        %v1201 = vpack.c.b16 %v1138, %v1135
        %v1202 = vpack.c.b16 %v1142, %v1139
        %v1203 = vpack.c.b16 %v1143, %v1140
        %v1204 = vpack.c.b16 %v1144, %v1141
        %v1205 = vpack.c.b16 %v1148, %v1145
        %v1206 = vpack.c.b16 %v1149, %v1146
        %v1207 = vpack.c.b16 %v1150, %v1147
        %v1208 = vpack.c.b16 %v1154, %v1151
        %v1209 = vpack.c.b16 %v1155, %v1152
        %v1210 = vpack.c.b16 %v1156, %v1153
        %v1211 = vpack.c.b16 %v1160, %v1157
        %v1212 = vpack.c.b16 %v1161, %v1158
        %v1213 = vpack.c.b16 %v1162, %v1159
        %v1214 = vpack.c.b16 %v1166, %v1163
        %v1215 = vpack.c.b16 %v1167, %v1164
        %v1216 = vpack.c.b16 %v1168, %v1165
        %1265 = vmatprep.subr.bf16.mxu0 %v1170
        %1266 = vmatpush1.bf16.msra.mxu0 %v1169
        %1267 = vmatprep.subr.bf16.mxu0 %v1173
        %1268 = vmatpush1.bf16.msra.mxu0 %v1172
        %1269 = vmatprep.subr.bf16.mxu0 %v1176
        %1270 = vmatpush1.bf16.msra.mxu0 %v1175
        %1271 = vmatprep.subr.bf16.mxu0 %v1179
        %1272 = vmatpush1.bf16.msra.mxu0 %v1178
        %1273 = vmatprep.subr.bf16.mxu0 %v1182
        %1274 = vmatpush1.bf16.msra.mxu0 %v1181
        %1275 = vmatprep.subr.bf16.mxu0 %v1185
        %1276 = vmatpush1.bf16.msra.mxu0 %v1184
        %1277 = vmatprep.subr.bf16.mxu0 %v1188
        %1278 = vmatpush1.bf16.msra.mxu0 %v1187
        %1279 = vmatprep.subr.bf16.mxu0 %v1191
        %1280 = vmatpush1.bf16.msra.mxu0 %v1190
        %1281 = vmatprep.subr.bf16.mxu0 %v1194
        %1282 = vmatpush1.bf16.msra.mxu0 %v1193
        %1283 = vmatprep.subr.bf16.mxu0 %v1197
        %1284 = vmatpush1.bf16.msra.mxu0 %v1196
        %1285 = vmatprep.subr.bf16.mxu0 %v1200
        %1286 = vmatpush1.bf16.msra.mxu0 %v1199
        %1287 = vmatprep.subr.bf16.mxu0 %v1203
        %1288 = vmatpush1.bf16.msra.mxu0 %v1202
        %1289 = vmatprep.subr.bf16.mxu0 %v1206
        %1290 = vmatpush1.bf16.msra.mxu0 %v1205
        %1291 = vmatprep.subr.bf16.mxu0 %v1209
        %1292 = vmatpush1.bf16.msra.mxu0 %v1208
        %1293 = vmatprep.subr.bf16.mxu0 %v1212
        %1294 = vmatpush1.bf16.msra.mxu0 %v1211
        %1295 = vmatprep.subr.bf16.mxu0 %v1215
        %1296 = vmatpush1.bf16.msra.mxu0 %v1214
        %1297 = vmatprep.mubr.bf16.mxu0 %v930
        %1298 = vmatmul.mubr.bf16.gmra.mrb[0].mxu0 %v929
        %v1299 = vpop.f32.mrb[0].mxu0
        %v1300 = vadd.f32 0.0, %v1299
        %v1301 = vpop.f32.mrb[0].mxu0
        %v1302 = vadd.f32 0.0, %v1301
        %v1303 = vpop.f32.mrb[0].mxu0
        %v1304 = vadd.f32 0.0, %v1303
        %v1305 = vpop.f32.mrb[0].mxu0
        %v1306 = vadd.f32 0.0, %v1305
        %1307 = vmatprep.mubr.bf16.mxu0 %v932
        %1308 = vmatmul.mubr.bf16.gmra.mrb[0].mxu0 %v931
        %v1309 = vpop.f32.mrb[0].mxu0
        %v1310 = vadd.f32 0.0, %v1309
        %v1311 = vpop.f32.mrb[0].mxu0
        %v1312 = vadd.f32 0.0, %v1311
        %v1313 = vpop.f32.mrb[0].mxu0
        %v1314 = vadd.f32 0.0, %v1313
        %v1315 = vpop.f32.mrb[0].mxu0
        %v1316 = vadd.f32 0.0, %v1315
        %1317 = vmatprep.mubr.bf16.mxu0 %v934
        %1318 = vmatmul.mubr.bf16.gmra.mrb[0].mxu0 %v933
        %v1319 = vpop.f32.mrb[0].mxu0
        %v1320 = vadd.f32 0.0, %v1319
        %v1321 = vpop.f32.mrb[0].mxu0
        %v1322 = vadd.f32 0.0, %v1321
        %v1323 = vpop.f32.mrb[0].mxu0
        %v1324 = vadd.f32 0.0, %v1323
        %v1325 = vpop.f32.mrb[0].mxu0
        %v1326 = vadd.f32 0.0, %v1325
        %1327 = vmatprep.mubr.bf16.mxu0 %v936
        %1328 = vmatmul.mubr.bf16.gmra.mrb[0].mxu0 %v935
        %v1329 = vpop.f32.mrb[0].mxu0
        %v1330 = vadd.f32 0.0, %v1329
        %v1331 = vpop.f32.mrb[0].mxu0
        %v1332 = vadd.f32 0.0, %v1331
        %v1333 = vpop.f32.mrb[0].mxu0
        %v1334 = vadd.f32 0.0, %v1333
        %v1335 = vpop.f32.mrb[0].mxu0
        %v1336 = vadd.f32 0.0, %v1335
        %1337 = vmatprep.mubr.bf16.mxu0 %v938
        %1338 = vmatmul.mubr.bf16.gmra.mrb[0].mxu0 %v937
        %v1339 = vpop.f32.mrb[0].mxu0
        %v1340 = vadd.f32 0.0, %v1339
        %v1341 = vpop.f32.mrb[0].mxu0
        %v1342 = vadd.f32 0.0, %v1341
        %v1343 = vpop.f32.mrb[0].mxu0
        %v1344 = vadd.f32 0.0, %v1343
        %v1345 = vpop.f32.mrb[0].mxu0
        %v1346 = vadd.f32 0.0, %v1345
        %1347 = vmatprep.mubr.bf16.mxu0 %v940
        %1348 = vmatmul.mubr.bf16.gmra.mrb[0].mxu0 %v939
        %v1349 = vpop.f32.mrb[0].mxu0
        %v1350 = vadd.f32 0.0, %v1349
        %v1351 = vpop.f32.mrb[0].mxu0
        %v1352 = vadd.f32 0.0, %v1351
        %v1353 = vpop.f32.mrb[0].mxu0
        %v1354 = vadd.f32 0.0, %v1353
        %v1355 = vpop.f32.mrb[0].mxu0
        %v1356 = vadd.f32 0.0, %v1355
        %1357 = vmatprep.mubr.bf16.mxu0 %v942
        %1358 = vmatmul.mubr.bf16.gmra.mrb[0].mxu0 %v941
        %v1359 = vpop.f32.mrb[0].mxu0
        %v1360 = vadd.f32 0.0, %v1359
        %v1361 = vpop.f32.mrb[0].mxu0
        %v1362 = vadd.f32 0.0, %v1361
        %v1363 = vpop.f32.mrb[0].mxu0
        %v1364 = vadd.f32 0.0, %v1363
        %v1365 = vpop.f32.mrb[0].mxu0
        %v1366 = vadd.f32 0.0, %v1365
        %1367 = vmatprep.mubr.bf16.mxu0 %v944
        %1368 = vmatmul.mubr.bf16.gmra.mrb[0].mxu0 %v943
        %v1369 = vpop.f32.mrb[0].mxu0
        %v1370 = vadd.f32 0.0, %v1369
        %v1371 = vpop.f32.mrb[0].mxu0
        %v1372 = vadd.f32 0.0, %v1371
        %v1373 = vpop.f32.mrb[0].mxu0
        %v1374 = vadd.f32 0.0, %v1373
        %v1375 = vpop.f32.mrb[0].mxu0
        %v1376 = vadd.f32 0.0, %v1375
        %1377 = vdwg.mxu0
        %1378 = vmatprep.subr.bf16.mxu0 0
        %1379 = vmatpush1.bf16.msra.mxu0 %v1171
        %1380 = vmatprep.subr.bf16.mxu0 0
        %1381 = vmatpush1.bf16.msra.mxu0 %v1174
        %1382 = vmatprep.subr.bf16.mxu0 0
        %1383 = vmatpush1.bf16.msra.mxu0 %v1177
        %1384 = vmatprep.subr.bf16.mxu0 0
        %1385 = vmatpush1.bf16.msra.mxu0 %v1180
        %1386 = vmatprep.subr.bf16.mxu0 0
        %1387 = vmatpush1.bf16.msra.mxu0 %v1183
        %1388 = vmatprep.subr.bf16.mxu0 0
        %1389 = vmatpush1.bf16.msra.mxu0 %v1186
        %1390 = vmatprep.subr.bf16.mxu0 0
        %1391 = vmatpush1.bf16.msra.mxu0 %v1189
        %1392 = vmatprep.subr.bf16.mxu0 0
        %1393 = vmatpush1.bf16.msra.mxu0 %v1192
        %1394 = vmatprep.subr.bf16.mxu0 0
        %1395 = vmatpush1.bf16.msra.mxu0 %v1195
        %1396 = vmatprep.subr.bf16.mxu0 0
        %1397 = vmatpush1.bf16.msra.mxu0 %v1198
        %1398 = vmatprep.subr.bf16.mxu0 0
        %1399 = vmatpush1.bf16.msra.mxu0 %v1201
        %1400 = vmatprep.subr.bf16.mxu0 0
        %1401 = vmatpush1.bf16.msra.mxu0 %v1204
        %1402 = vmatprep.subr.bf16.mxu0 0
        %1403 = vmatpush1.bf16.msra.mxu0 %v1207
        %1404 = vmatprep.subr.bf16.mxu0 0
        %1405 = vmatpush1.bf16.msra.mxu0 %v1210
        %1406 = vmatprep.subr.bf16.mxu0 0
        %1407 = vmatpush1.bf16.msra.mxu0 %v1213
        %1408 = vmatprep.subr.bf16.mxu0 0
        %1409 = vmatpush1.bf16.msra.mxu0 %v1216
        %1410 = vmatprep.mubr.bf16.mxu0 %v930
        %1411 = vmatmul.mubr.bf16.gmra.mrb[0].mxu0 %v929
        %v1412 = vpop.f32.mrb[0].mxu0
        %v1413 = vadd.f32 0.0, %v1412
        %v1414 = vpop.f32.mrb[0].mxu0
        %v1415 = vpop.f32.mrb[0].mxu0
        %v1416 = vadd.f32 0.0, %v1415
        %v1417 = vpop.f32.mrb[0].mxu0
        %1418 = vmatprep.mubr.bf16.mxu0 %v932
        %1419 = vmatmul.mubr.bf16.gmra.mrb[0].mxu0 %v931
        %v1420 = vpop.f32.mrb[0].mxu0
        %v1421 = vadd.f32 0.0, %v1420
        %v1422 = vpop.f32.mrb[0].mxu0
        %v1423 = vpop.f32.mrb[0].mxu0
        %v1424 = vadd.f32 0.0, %v1423
        %v1425 = vpop.f32.mrb[0].mxu0
        %1426 = vmatprep.mubr.bf16.mxu0 %v934
        %1427 = vmatmul.mubr.bf16.gmra.mrb[0].mxu0 %v933
        %v1428 = vpop.f32.mrb[0].mxu0
        %v1429 = vadd.f32 0.0, %v1428
        %v1430 = vpop.f32.mrb[0].mxu0
        %v1431 = vpop.f32.mrb[0].mxu0
        %v1432 = vadd.f32 0.0, %v1431
        %v1433 = vpop.f32.mrb[0].mxu0
        %1434 = vmatprep.mubr.bf16.mxu0 %v936
        %1435 = vmatmul.mubr.bf16.gmra.mrb[0].mxu0 %v935
        %v1436 = vpop.f32.mrb[0].mxu0
        %v1437 = vadd.f32 0.0, %v1436
        %v1438 = vpop.f32.mrb[0].mxu0
        %v1439 = vpop.f32.mrb[0].mxu0
        %v1440 = vadd.f32 0.0, %v1439
        %v1441 = vpop.f32.mrb[0].mxu0
        %1442 = vmatprep.mubr.bf16.mxu0 %v938
        %1443 = vmatmul.mubr.bf16.gmra.mrb[0].mxu0 %v937
        %v1444 = vpop.f32.mrb[0].mxu0
        %v1445 = vadd.f32 0.0, %v1444
        %v1446 = vpop.f32.mrb[0].mxu0
        %v1447 = vpop.f32.mrb[0].mxu0
        %v1448 = vadd.f32 0.0, %v1447
        %v1449 = vpop.f32.mrb[0].mxu0
        %1450 = vmatprep.mubr.bf16.mxu0 %v940
        %1451 = vmatmul.mubr.bf16.gmra.mrb[0].mxu0 %v939
        %v1452 = vpop.f32.mrb[0].mxu0
        %v1453 = vadd.f32 0.0, %v1452
        %v1454 = vpop.f32.mrb[0].mxu0
        %v1455 = vpop.f32.mrb[0].mxu0
        %v1456 = vadd.f32 0.0, %v1455
        %v1457 = vpop.f32.mrb[0].mxu0
        %1458 = vmatprep.mubr.bf16.mxu0 %v942
        %1459 = vmatmul.mubr.bf16.gmra.mrb[0].mxu0 %v941
        %v1460 = vpop.f32.mrb[0].mxu0
        %v1461 = vadd.f32 0.0, %v1460
        %v1462 = vpop.f32.mrb[0].mxu0
        %v1463 = vpop.f32.mrb[0].mxu0
        %v1464 = vadd.f32 0.0, %v1463
        %v1465 = vpop.f32.mrb[0].mxu0
        %1466 = vmatprep.mubr.bf16.mxu0 %v944
        %1467 = vmatmul.mubr.bf16.gmra.mrb[0].mxu0 %v943
        %v1468 = vpop.f32.mrb[0].mxu0
        %v1469 = vadd.f32 0.0, %v1468
        %v1470 = vpop.f32.mrb[0].mxu0
        %v1471 = vpop.f32.mrb[0].mxu0
        %v1472 = vadd.f32 0.0, %v1471
        %v1473 = vpop.f32.mrb[0].mxu0
        %1474 = vdwg.mxu0
        %v1475 = vpack.c.bf16 %v1304, %v1300
        %v1476 = vpack.c.bf16 %v1306, %v1302
        %v1477 = vpack.c.bf16 %v1416, %v1413
        %v1478 = vpack.c.bf16 %v1314, %v1310
        %v1479 = vpack.c.bf16 %v1316, %v1312
        %v1480 = vpack.c.bf16 %v1424, %v1421
        %v1481 = vpack.c.bf16 %v1324, %v1320
        %v1482 = vpack.c.bf16 %v1326, %v1322
        %v1483 = vpack.c.bf16 %v1432, %v1429
        %v1484 = vpack.c.bf16 %v1334, %v1330
        %v1485 = vpack.c.bf16 %v1336, %v1332
        %v1486 = vpack.c.bf16 %v1440, %v1437
        %v1487 = vpack.c.bf16 %v1344, %v1340
        %v1488 = vpack.c.bf16 %v1346, %v1342
        %v1489 = vpack.c.bf16 %v1448, %v1445
        %v1490 = vpack.c.bf16 %v1354, %v1350
        %v1491 = vpack.c.bf16 %v1356, %v1352
        %v1492 = vpack.c.bf16 %v1456, %v1453
        %v1493 = vpack.c.bf16 %v1364, %v1360
        %v1494 = vpack.c.bf16 %v1366, %v1362
        %v1495 = vpack.c.bf16 %v1464, %v1461
        %v1496 = vpack.c.bf16 %v1374, %v1370
        %v1497 = vpack.c.bf16 %v1376, %v1372
        %v1498 = vpack.c.bf16 %v1472, %v1469
        %1499 = vmatprep.subr.bf16.mxu0 %v1476
        %1500 = vmatpush1.bf16.msra.mxu0 %v1475
        %1501 = vmatprep.subr.bf16.mxu0 %v1479
        %1502 = vmatpush1.bf16.msra.mxu0 %v1478
        %1503 = vmatprep.subr.bf16.mxu0 %v1482
        %1504 = vmatpush1.bf16.msra.mxu0 %v1481
        %1505 = vmatprep.subr.bf16.mxu0 %v1485
        %1506 = vmatpush1.bf16.msra.mxu0 %v1484
        %1507 = vmatprep.subr.bf16.mxu0 %v1488
        %1508 = vmatpush1.bf16.msra.mxu0 %v1487
        %1509 = vmatprep.subr.bf16.mxu0 %v1491
        %1510 = vmatpush1.bf16.msra.mxu0 %v1490
        %1511 = vmatprep.subr.bf16.mxu0 %v1494
        %1512 = vmatpush1.bf16.msra.mxu0 %v1493
        %1513 = vmatprep.subr.bf16.mxu0 %v1497
        %1514 = vmatpush1.bf16.msra.mxu0 %v1496
        %1515 = vmatprep.subr.bf16.mxu0 0
        %1516 = vmatpush1.bf16.msra.mxu0 0
        %1517 = vmatprep.subr.bf16.mxu0 0
        %1518 = vmatpush1.bf16.msra.mxu0 0
        %1519 = vmatprep.subr.bf16.mxu0 0
        %1520 = vmatpush1.bf16.msra.mxu0 0
        %1521 = vmatprep.subr.bf16.mxu0 0
        %1522 = vmatpush1.bf16.msra.mxu0 0
        %1523 = vmatprep.subr.bf16.mxu0 0
        %1524 = vmatpush1.bf16.msra.mxu0 0
        %1525 = vmatprep.subr.bf16.mxu0 0
        %1526 = vmatpush1.bf16.msra.mxu0 0
        %1527 = vmatprep.subr.bf16.mxu0 0
        %1528 = vmatpush1.bf16.msra.mxu0 0
        %1529 = vmatprep.subr.bf16.mxu0 0
        %1530 = vmatpush1.bf16.msra.mxu0 0
        %1531 = vmatprep.mubr.bf16.mxu0 0
        %1532 = vmatmul.mubr.bf16.gmra.mrb[0].mxu0 %v461
        %v1533 = vpop.f32.mrb[0].mxu0
        %v1534 = vadd.f32 0.0, %v1533
        %v1535 = vpop.f32.mrb[0].mxu0
        %v1536 = vadd.f32 0.0, %v1535
        %v1537 = vpop.f32.mrb[0].mxu0
        %v1538 = vadd.f32 0.0, %v1537
        %v1539 = vpop.f32.mrb[0].mxu0
        %v1540 = vadd.f32 0.0, %v1539
        %1541 = vmatprep.mubr.bf16.mxu0 0
        %1542 = vmatmul.mubr.bf16.gmra.mrb[0].mxu0 %v462
        %v1543 = vpop.f32.mrb[0].mxu0
        %v1544 = vadd.f32 0.0, %v1543
        %v1545 = vpop.f32.mrb[0].mxu0
        %v1546 = vadd.f32 0.0, %v1545
        %v1547 = vpop.f32.mrb[0].mxu0
        %v1548 = vadd.f32 0.0, %v1547
        %v1549 = vpop.f32.mrb[0].mxu0
        %v1550 = vadd.f32 0.0, %v1549
        %1551 = vmatprep.mubr.bf16.mxu0 0
        %1552 = vmatmul.mubr.bf16.gmra.mrb[0].mxu0 %v463
        %v1553 = vpop.f32.mrb[0].mxu0
        %v1554 = vadd.f32 0.0, %v1553
        %v1555 = vpop.f32.mrb[0].mxu0
        %v1556 = vadd.f32 0.0, %v1555
        %v1557 = vpop.f32.mrb[0].mxu0
        %v1558 = vadd.f32 0.0, %v1557
        %v1559 = vpop.f32.mrb[0].mxu0
        %v1560 = vadd.f32 0.0, %v1559
        %1561 = vmatprep.mubr.bf16.mxu0 0
        %1562 = vmatmul.mubr.bf16.gmra.mrb[0].mxu0 %v464
        %v1563 = vpop.f32.mrb[0].mxu0
        %v1564 = vadd.f32 0.0, %v1563
        %v1565 = vpop.f32.mrb[0].mxu0
        %v1566 = vadd.f32 0.0, %v1565
        %v1567 = vpop.f32.mrb[0].mxu0
        %v1568 = vadd.f32 0.0, %v1567
        %v1569 = vpop.f32.mrb[0].mxu0
        %v1570 = vadd.f32 0.0, %v1569
        %1571 = vmatprep.mubr.bf16.mxu0 0
        %1572 = vmatmul.mubr.bf16.gmra.mrb[0].mxu0 %v465
        %v1573 = vpop.f32.mrb[0].mxu0
        %v1574 = vadd.f32 0.0, %v1573
        %v1575 = vpop.f32.mrb[0].mxu0
        %v1576 = vadd.f32 0.0, %v1575
        %v1577 = vpop.f32.mrb[0].mxu0
        %v1578 = vadd.f32 0.0, %v1577
        %v1579 = vpop.f32.mrb[0].mxu0
        %v1580 = vadd.f32 0.0, %v1579
        %1581 = vmatprep.mubr.bf16.mxu0 0
        %1582 = vmatmul.mubr.bf16.gmra.mrb[0].mxu0 %v466
        %v1583 = vpop.f32.mrb[0].mxu0
        %v1584 = vadd.f32 0.0, %v1583
        %v1585 = vpop.f32.mrb[0].mxu0
        %v1586 = vadd.f32 0.0, %v1585
        %v1587 = vpop.f32.mrb[0].mxu0
        %v1588 = vadd.f32 0.0, %v1587
        %v1589 = vpop.f32.mrb[0].mxu0
        %v1590 = vadd.f32 0.0, %v1589
        %1591 = vmatprep.mubr.bf16.mxu0 0
        %1592 = vmatmul.mubr.bf16.gmra.mrb[0].mxu0 %v467
        %v1593 = vpop.f32.mrb[0].mxu0
        %v1594 = vadd.f32 0.0, %v1593
        %v1595 = vpop.f32.mrb[0].mxu0
        %v1596 = vadd.f32 0.0, %v1595
        %v1597 = vpop.f32.mrb[0].mxu0
        %v1598 = vadd.f32 0.0, %v1597
        %v1599 = vpop.f32.mrb[0].mxu0
        %v1600 = vadd.f32 0.0, %v1599
        %1601 = vmatprep.mubr.bf16.mxu0 0
        %1602 = vmatmul.mubr.bf16.gmra.mrb[0].mxu0 %v468
        %v1603 = vpop.f32.mrb[0].mxu0
        %v1604 = vadd.f32 0.0, %v1603
        %v1605 = vpop.f32.mrb[0].mxu0
        %v1606 = vadd.f32 0.0, %v1605
        %v1607 = vpop.f32.mrb[0].mxu0
        %v1608 = vadd.f32 0.0, %v1607
        %v1609 = vpop.f32.mrb[0].mxu0
        %v1610 = vadd.f32 0.0, %v1609
        %1611 = vdwg.mxu0
        %1612 = vmatprep.subr.bf16.mxu0 0
        %1613 = vmatpush1.bf16.msra.mxu0 %v1477
        %1614 = vmatprep.subr.bf16.mxu0 0
        %1615 = vmatpush1.bf16.msra.mxu0 %v1480
        %1616 = vmatprep.subr.bf16.mxu0 0
        %1617 = vmatpush1.bf16.msra.mxu0 %v1483
        %1618 = vmatprep.subr.bf16.mxu0 0
        %1619 = vmatpush1.bf16.msra.mxu0 %v1486
        %1620 = vmatprep.subr.bf16.mxu0 0
        %1621 = vmatpush1.bf16.msra.mxu0 %v1489
        %1622 = vmatprep.subr.bf16.mxu0 0
        %1623 = vmatpush1.bf16.msra.mxu0 %v1492
        %1624 = vmatprep.subr.bf16.mxu0 0
        %1625 = vmatpush1.bf16.msra.mxu0 %v1495
        %1626 = vmatprep.subr.bf16.mxu0 0
        %1627 = vmatpush1.bf16.msra.mxu0 %v1498
        %1628 = vmatprep.subr.bf16.mxu0 0
        %1629 = vmatpush1.bf16.msra.mxu0 0
        %1630 = vmatprep.subr.bf16.mxu0 0
        %1631 = vmatpush1.bf16.msra.mxu0 0
        %1632 = vmatprep.subr.bf16.mxu0 0
        %1633 = vmatpush1.bf16.msra.mxu0 0
        %1634 = vmatprep.subr.bf16.mxu0 0
        %1635 = vmatpush1.bf16.msra.mxu0 0
        %1636 = vmatprep.subr.bf16.mxu0 0
        %1637 = vmatpush1.bf16.msra.mxu0 0
        %1638 = vmatprep.subr.bf16.mxu0 0
        %1639 = vmatpush1.bf16.msra.mxu0 0
        %1640 = vmatprep.subr.bf16.mxu0 0
        %1641 = vmatpush1.bf16.msra.mxu0 0
        %1642 = vmatprep.subr.bf16.mxu0 0
        %1643 = vmatpush1.bf16.msra.mxu0 0
        %1644 = vmatprep.mubr.bf16.mxu0 0
        %1645 = vmatmul.mubr.bf16.gmra.mrb[0].mxu0 %v461
        %v1646 = vpop.f32.mrb[0].mxu0
        %v1647 = vadd.f32 0.0, %v1646
        %v1648 = vpop.f32.mrb[0].mxu0
        %v1649 = vpop.f32.mrb[0].mxu0
        %v1650 = vadd.f32 0.0, %v1649
        %v1651 = vpop.f32.mrb[0].mxu0
        %1652 = vmatprep.mubr.bf16.mxu0 0
        %1653 = vmatmul.mubr.bf16.gmra.mrb[0].mxu0 %v462
        %v1654 = vpop.f32.mrb[0].mxu0
        %v1655 = vadd.f32 0.0, %v1654
        %v1656 = vpop.f32.mrb[0].mxu0
        %v1657 = vpop.f32.mrb[0].mxu0
        %v1658 = vadd.f32 0.0, %v1657
        %v1659 = vpop.f32.mrb[0].mxu0
        %1660 = vmatprep.mubr.bf16.mxu0 0
        %1661 = vmatmul.mubr.bf16.gmra.mrb[0].mxu0 %v463
        %v1662 = vpop.f32.mrb[0].mxu0
        %v1663 = vadd.f32 0.0, %v1662
        %v1664 = vpop.f32.mrb[0].mxu0
        %v1665 = vpop.f32.mrb[0].mxu0
        %v1666 = vadd.f32 0.0, %v1665
        %v1667 = vpop.f32.mrb[0].mxu0
        %1668 = vmatprep.mubr.bf16.mxu0 0
        %1669 = vmatmul.mubr.bf16.gmra.mrb[0].mxu0 %v464
        %v1670 = vpop.f32.mrb[0].mxu0
        %v1671 = vadd.f32 0.0, %v1670
        %v1672 = vpop.f32.mrb[0].mxu0
        %v1673 = vpop.f32.mrb[0].mxu0
        %v1674 = vadd.f32 0.0, %v1673
        %v1675 = vpop.f32.mrb[0].mxu0
        %1676 = vmatprep.mubr.bf16.mxu0 0
        %1677 = vmatmul.mubr.bf16.gmra.mrb[0].mxu0 %v465
        %v1678 = vpop.f32.mrb[0].mxu0
        %v1679 = vadd.f32 0.0, %v1678
        %v1680 = vpop.f32.mrb[0].mxu0
        %v1681 = vpop.f32.mrb[0].mxu0
        %v1682 = vadd.f32 0.0, %v1681
        %v1683 = vpop.f32.mrb[0].mxu0
        %1684 = vmatprep.mubr.bf16.mxu0 0
        %1685 = vmatmul.mubr.bf16.gmra.mrb[0].mxu0 %v466
        %v1686 = vpop.f32.mrb[0].mxu0
        %v1687 = vadd.f32 0.0, %v1686
        %v1688 = vpop.f32.mrb[0].mxu0
        %v1689 = vpop.f32.mrb[0].mxu0
        %v1690 = vadd.f32 0.0, %v1689
        %v1691 = vpop.f32.mrb[0].mxu0
        %1692 = vmatprep.mubr.bf16.mxu0 0
        %1693 = vmatmul.mubr.bf16.gmra.mrb[0].mxu0 %v467
        %v1694 = vpop.f32.mrb[0].mxu0
        %v1695 = vadd.f32 0.0, %v1694
        %v1696 = vpop.f32.mrb[0].mxu0
        %v1697 = vpop.f32.mrb[0].mxu0
        %v1698 = vadd.f32 0.0, %v1697
        %v1699 = vpop.f32.mrb[0].mxu0
        %1700 = vmatprep.mubr.bf16.mxu0 0
        %1701 = vmatmul.mubr.bf16.gmra.mrb[0].mxu0 %v468
        %v1702 = vpop.f32.mrb[0].mxu0
        %v1703 = vadd.f32 0.0, %v1702
        %v1704 = vpop.f32.mrb[0].mxu0
        %v1705 = vpop.f32.mrb[0].mxu0
        %v1706 = vadd.f32 0.0, %v1705
        %v1707 = vpop.f32.mrb[0].mxu0
        %1708 = vdwg.mxu0
        %v1709 = vmul.f32 %v1534, 0.70710677
        %v1710 = vmul.f32 %v1536, 0.70710677
        %v1711 = vmul.f32 %v1647, 0.70710677
        %v1712 = vmul.f32 %v1538, 0.70710677
        %v1713 = vmul.f32 %v1540, 0.70710677
        %v1714 = vmul.f32 %v1650, 0.70710677
        %v1715 = vmul.f32 %v1544, 0.70710677
        %v1716 = vmul.f32 %v1546, 0.70710677
        %v1717 = vmul.f32 %v1655, 0.70710677
        %v1718 = vmul.f32 %v1548, 0.70710677
        %v1719 = vmul.f32 %v1550, 0.70710677
        %v1720 = vmul.f32 %v1658, 0.70710677
        %v1721 = vmul.f32 %v1554, 0.70710677
        %v1722 = vmul.f32 %v1556, 0.70710677
        %v1723 = vmul.f32 %v1663, 0.70710677
        %v1724 = vmul.f32 %v1558, 0.70710677
        %v1725 = vmul.f32 %v1560, 0.70710677
        %v1726 = vmul.f32 %v1666, 0.70710677
        %v1727 = vmul.f32 %v1564, 0.70710677
        %v1728 = vmul.f32 %v1566, 0.70710677
        %v1729 = vmul.f32 %v1671, 0.70710677
        %v1730 = vmul.f32 %v1568, 0.70710677
        %v1731 = vmul.f32 %v1570, 0.70710677
        %v1732 = vmul.f32 %v1674, 0.70710677
        %v1733 = vmul.f32 %v1574, 0.70710677
        %v1734 = vmul.f32 %v1576, 0.70710677
        %v1735 = vmul.f32 %v1679, 0.70710677
        %v1736 = vmul.f32 %v1578, 0.70710677
        %v1737 = vmul.f32 %v1580, 0.70710677
        %v1738 = vmul.f32 %v1682, 0.70710677
        %v1739 = vmul.f32 %v1584, 0.70710677
        %v1740 = vmul.f32 %v1586, 0.70710677
        %v1741 = vmul.f32 %v1687, 0.70710677
        %v1742 = vmul.f32 %v1588, 0.70710677
        %v1743 = vmul.f32 %v1590, 0.70710677
        %v1744 = vmul.f32 %v1690, 0.70710677
        %v1745 = vmul.f32 %v1594, 0.70710677
        %v1746 = vmul.f32 %v1596, 0.70710677
        %v1747 = vmul.f32 %v1695, 0.70710677
        %v1748 = vmul.f32 %v1598, 0.70710677
        %v1749 = vmul.f32 %v1600, 0.70710677
        %v1750 = vmul.f32 %v1698, 0.70710677
        %v1751 = vmul.f32 %v1604, 0.70710677
        %v1752 = vmul.f32 %v1606, 0.70710677
        %v1753 = vmul.f32 %v1703, 0.70710677
        %v1754 = vmul.f32 %v1608, 0.70710677
        %v1755 = vmul.f32 %v1610, 0.70710677
        %v1756 = vmul.f32 %v1706, 0.70710677
        %v1757 = vpack.c.bf16 %v1712, %v1709
        %v1758 = vpack.c.bf16 %v1713, %v1710
        %v1759 = vpack.c.bf16 %v1714, %v1711
        %v1760 = vpack.c.bf16 %v1718, %v1715
        %v1761 = vpack.c.bf16 %v1719, %v1716
        %v1762 = vpack.c.bf16 %v1720, %v1717
        %v1763 = vpack.c.bf16 %v1724, %v1721
        %v1764 = vpack.c.bf16 %v1725, %v1722
        %v1765 = vpack.c.bf16 %v1726, %v1723
        %v1766 = vpack.c.bf16 %v1730, %v1727
        %v1767 = vpack.c.bf16 %v1731, %v1728
        %v1768 = vpack.c.bf16 %v1732, %v1729
        %v1769 = vpack.c.bf16 %v1736, %v1733
        %v1770 = vpack.c.bf16 %v1737, %v1734
        %v1771 = vpack.c.bf16 %v1738, %v1735
        %v1772 = vpack.c.bf16 %v1742, %v1739
        %v1773 = vpack.c.bf16 %v1743, %v1740
        %v1774 = vpack.c.bf16 %v1744, %v1741
        %v1775 = vpack.c.bf16 %v1748, %v1745
        %v1776 = vpack.c.bf16 %v1749, %v1746
        %v1777 = vpack.c.bf16 %v1750, %v1747
        %v1778 = vpack.c.bf16 %v1754, %v1751
        %v1779 = vpack.c.bf16 %v1755, %v1752
        %v1780 = vpack.c.bf16 %v1756, %v1753
        %v1781 = vld [vmem:[%s8] sm:$0xf]
        %v1782 = vld [vmem:[%s8 + $0x4] sm:$0xf]
        %v1783 = vld [vmem:[%s8 + $0x8] sm:$0xf]
        %v1784 = vld [vmem:[%s8 + $0xc] sm:$0xf]
        %v1785 = vld [vmem:[%s8 + $0x10] sm:$0xf]
        %v1786 = vld [vmem:[%s8 + $0x14] sm:$0xf]
        %v1787 = vld [vmem:[%s8 + $0x18] sm:$0xf]
        %v1788 = vld [vmem:[%s8 + $0x1c] sm:$0xf]
        %v1789 = vld [vmem:[%s8 + $0x20] sm:$0xf]
        %v1790 = vld [vmem:[%s8 + $0x24] sm:$0xf]
        %v1791 = vld [vmem:[%s8 + $0x28] sm:$0xf]
        %v1792 = vld [vmem:[%s8 + $0x2c] sm:$0xf]
        %v1793 = vld [vmem:[%s8 + $0x30] sm:$0xf]
        %v1794 = vld [vmem:[%s8 + $0x34] sm:$0xf]
        %v1795 = vld [vmem:[%s8 + $0x38] sm:$0xf]
        %v1796 = vld [vmem:[%s8 + $0x3c] sm:$0xf]
        %v1797 = vld [vmem:[%s8 + $0x40] sm:$0xf]
        %v1798 = vld [vmem:[%s8 + $0x44] sm:$0xf]
        %v1799 = vld [vmem:[%s8 + $0x48] sm:$0xf]
        %v1800 = vld [vmem:[%s8 + $0x4c] sm:$0xf]
        %v1801 = vld [vmem:[%s8 + $0x50] sm:$0xf]
        %v1802 = vld [vmem:[%s8 + $0x54] sm:$0xf]
        %v1803 = vld [vmem:[%s8 + $0x58] sm:$0xf]
        %v1804 = vld [vmem:[%s8 + $0x5c] sm:$0xf]
        %v1805 = vld [vmem:[%s8 + $0x60] sm:$0xf]
        %v1806 = vld [vmem:[%s8 + $0x64] sm:$0xf]
        %v1807 = vld [vmem:[%s8 + $0x68] sm:$0xf]
        %v1808 = vld [vmem:[%s8 + $0x6c] sm:$0xf]
        %v1809 = vld [vmem:[%s8 + $0x70] sm:$0xf]
        %v1810 = vld [vmem:[%s8 + $0x74] sm:$0xf]
        %v1811 = vld [vmem:[%s8 + $0x78] sm:$0xf]
        %v1812 = vld [vmem:[%s8 + $0x7c] sm:$0xf]
        %v1813 = vld [vmem:[%s8 + $0x80] sm:$0xf]
        %v1814 = vld [vmem:[%s8 + $0x84] sm:$0xf]
        %v1815 = vld [vmem:[%s8 + $0x88] sm:$0xf]
        %v1816 = vld [vmem:[%s8 + $0x8c] sm:$0xf]
        %v1817 = vld [vmem:[%s8 + $0x90] sm:$0xf]
        %v1818 = vld [vmem:[%s8 + $0x94] sm:$0xf]
        %v1819 = vld [vmem:[%s8 + $0x98] sm:$0xf]
        %v1820 = vld [vmem:[%s8 + $0x9c] sm:$0xf]
        %v1821 = vld [vmem:[%s8 + $0xa0] sm:$0xf]
        %v1822 = vld [vmem:[%s8 + $0xa4] sm:$0xf]
        %v1823 = vld [vmem:[%s8 + $0xa8] sm:$0xf]
        %v1824 = vld [vmem:[%s8 + $0xac] sm:$0xf]
        %v1825 = vld [vmem:[%s8 + $0xb0] sm:$0xf]
        %v1826 = vld [vmem:[%s8 + $0xb4] sm:$0xf]
        %v1827 = vld [vmem:[%s8 + $0xb8] sm:$0xf]
        %v1828 = vld [vmem:[%s8 + $0xbc] sm:$0xf]
        %v1877 = vunpack.c.l.b16 %v1781
        %v1878 = vunpack.c.l.b16 %v1782
        %v1879 = vunpack.c.l.b16 %v1783
        %v1880 = vunpack.c.l.b16 %v1784
        %v1881 = vunpack.c.l.b16 %v1785
        %v1882 = vunpack.c.l.b16 %v1786
        %v1883 = vunpack.c.l.b16 %v1787
        %v1884 = vunpack.c.l.b16 %v1788
        %v1885 = vunpack.c.l.b16 %v1789
        %v1886 = vunpack.c.l.b16 %v1790
        %v1887 = vunpack.c.l.b16 %v1791
        %v1888 = vunpack.c.l.b16 %v1792
        %v1889 = vunpack.c.l.b16 %v1793
        %v1890 = vunpack.c.l.b16 %v1794
        %v1891 = vunpack.c.l.b16 %v1795
        %v1892 = vunpack.c.l.b16 %v1796
        %v1893 = vunpack.c.l.b16 %v1797
        %v1894 = vunpack.c.l.b16 %v1798
        %v1895 = vunpack.c.l.b16 %v1799
        %v1896 = vunpack.c.l.b16 %v1800
        %v1897 = vunpack.c.l.b16 %v1801
        %v1898 = vunpack.c.l.b16 %v1802
        %v1899 = vunpack.c.l.b16 %v1803
        %v1900 = vunpack.c.l.b16 %v1804
        %v1901 = vunpack.c.l.b16 %v1805
        %v1902 = vunpack.c.l.b16 %v1806
        %v1903 = vunpack.c.l.b16 %v1807
        %v1904 = vunpack.c.l.b16 %v1808
        %v1905 = vunpack.c.l.b16 %v1809
        %v1906 = vunpack.c.l.b16 %v1810
        %v1907 = vunpack.c.l.b16 %v1811
        %v1908 = vunpack.c.l.b16 %v1812
        %v1909 = vunpack.c.l.b16 %v1813
        %v1910 = vunpack.c.l.b16 %v1814
        %v1911 = vunpack.c.l.b16 %v1815
        %v1912 = vunpack.c.l.b16 %v1816
        %v1913 = vunpack.c.l.b16 %v1817
        %v1914 = vunpack.c.l.b16 %v1818
        %v1915 = vunpack.c.l.b16 %v1819
        %v1916 = vunpack.c.l.b16 %v1820
        %v1917 = vunpack.c.l.b16 %v1821
        %v1918 = vunpack.c.l.b16 %v1822
        %v1919 = vunpack.c.l.b16 %v1823
        %v1920 = vunpack.c.l.b16 %v1824
        %v1921 = vunpack.c.l.b16 %v1825
        %v1922 = vunpack.c.l.b16 %v1826
        %v1923 = vunpack.c.l.b16 %v1827
        %v1924 = vunpack.c.l.b16 %v1828
        %v1925 = vpack.c.b16 %v1878, %v1877
        %v1926 = vpack.c.b16 %v1880, %v1879
        %v1927 = vpack.c.b16 %v1882, %v1881
        %v1928 = vpack.c.b16 %v1884, %v1883
        %v1929 = vpack.c.b16 %v1886, %v1885
        %v1930 = vpack.c.b16 %v1888, %v1887
        %v1931 = vpack.c.b16 %v1890, %v1889
        %v1932 = vpack.c.b16 %v1892, %v1891
        %v1933 = vpack.c.b16 %v1894, %v1893
        %v1934 = vpack.c.b16 %v1896, %v1895
        %v1935 = vpack.c.b16 %v1898, %v1897
        %v1936 = vpack.c.b16 %v1900, %v1899
        %v1937 = vpack.c.b16 %v1902, %v1901
        %v1938 = vpack.c.b16 %v1904, %v1903
        %v1939 = vpack.c.b16 %v1906, %v1905
        %v1940 = vpack.c.b16 %v1908, %v1907
        %v1941 = vpack.c.b16 %v1910, %v1909
        %v1942 = vpack.c.b16 %v1912, %v1911
        %v1943 = vpack.c.b16 %v1914, %v1913
        %v1944 = vpack.c.b16 %v1916, %v1915
        %v1945 = vpack.c.b16 %v1918, %v1917
        %v1946 = vpack.c.b16 %v1920, %v1919
        %v1947 = vpack.c.b16 %v1922, %v1921
        %v1948 = vpack.c.b16 %v1924, %v1923
        %1973 = vmatprep.subr.bf16.mxu0 0
        %1974 = vmatpush1.bf16.msra.mxu0 %v1925
        %1975 = vmatprep.subr.bf16.mxu0 0
        %1976 = vmatpush1.bf16.msra.mxu0 %v1926
        %1977 = vmatprep.subr.bf16.mxu0 0
        %1978 = vmatpush1.bf16.msra.mxu0 %v1927
        %1979 = vmatprep.subr.bf16.mxu0 0
        %1980 = vmatpush1.bf16.msra.mxu0 %v1928
        %1981 = vmatprep.subr.bf16.mxu0 0
        %1982 = vmatpush1.bf16.msra.mxu0 %v1929
        %1983 = vmatprep.subr.bf16.mxu0 0
        %1984 = vmatpush1.bf16.msra.mxu0 %v1930
        %1985 = vmatprep.subr.bf16.mxu0 0
        %1986 = vmatpush1.bf16.msra.mxu0 %v1931
        %1987 = vmatprep.subr.bf16.mxu0 0
        %1988 = vmatpush1.bf16.msra.mxu0 %v1932
        %1989 = vmatprep.subr.bf16.mxu0 0
        %1990 = vmatpush1.bf16.msra.mxu0 %v1933
        %1991 = vmatprep.subr.bf16.mxu0 0
        %1992 = vmatpush1.bf16.msra.mxu0 %v1934
        %1993 = vmatprep.subr.bf16.mxu0 0
        %1994 = vmatpush1.bf16.msra.mxu0 %v1935
        %1995 = vmatprep.subr.bf16.mxu0 0
        %1996 = vmatpush1.bf16.msra.mxu0 %v1936
        %1997 = vmatprep.subr.bf16.mxu0 0
        %1998 = vmatpush1.bf16.msra.mxu0 %v1937
        %1999 = vmatprep.subr.bf16.mxu0 0
        %2000 = vmatpush1.bf16.msra.mxu0 %v1938
        %2001 = vmatprep.subr.bf16.mxu0 0
        %2002 = vmatpush1.bf16.msra.mxu0 %v1939
        %2003 = vmatprep.subr.bf16.mxu0 0
        %2004 = vmatpush1.bf16.msra.mxu0 %v1940
        %2005 = vmatprep.mubr.bf16.mxu0 %v1758
        %2006 = vmatmul.mubr.bf16.gmra.mrb[0].mxu0 %v1757
        %v2007 = vpop.f32.mrb[0].mxu0
        %v2008 = vadd.f32 0.0, %v2007
        %v2009 = vpop.f32.mrb[0].mxu0
        %v2010 = vpop.f32.mrb[0].mxu0
        %v2011 = vadd.f32 0.0, %v2010
        %v2012 = vpop.f32.mrb[0].mxu0
        %2013 = vmatprep.mubr.bf16.mxu0 %v1761
        %2014 = vmatmul.mubr.bf16.gmra.mrb[0].mxu0 %v1760
        %v2015 = vpop.f32.mrb[0].mxu0
        %v2016 = vadd.f32 0.0, %v2015
        %v2017 = vpop.f32.mrb[0].mxu0
        %v2018 = vpop.f32.mrb[0].mxu0
        %v2019 = vadd.f32 0.0, %v2018
        %v2020 = vpop.f32.mrb[0].mxu0
        %2021 = vmatprep.mubr.bf16.mxu0 %v1764
        %2022 = vmatmul.mubr.bf16.gmra.mrb[0].mxu0 %v1763
        %v2023 = vpop.f32.mrb[0].mxu0
        %v2024 = vadd.f32 0.0, %v2023
        %v2025 = vpop.f32.mrb[0].mxu0
        %v2026 = vpop.f32.mrb[0].mxu0
        %v2027 = vadd.f32 0.0, %v2026
        %v2028 = vpop.f32.mrb[0].mxu0
        %2029 = vmatprep.mubr.bf16.mxu0 %v1767
        %2030 = vmatmul.mubr.bf16.gmra.mrb[0].mxu0 %v1766
        %v2031 = vpop.f32.mrb[0].mxu0
        %v2032 = vadd.f32 0.0, %v2031
        %v2033 = vpop.f32.mrb[0].mxu0
        %v2034 = vpop.f32.mrb[0].mxu0
        %v2035 = vadd.f32 0.0, %v2034
        %v2036 = vpop.f32.mrb[0].mxu0
        %2037 = vmatprep.mubr.bf16.mxu0 %v1770
        %2038 = vmatmul.mubr.bf16.gmra.mrb[0].mxu0 %v1769
        %v2039 = vpop.f32.mrb[0].mxu0
        %v2040 = vadd.f32 0.0, %v2039
        %v2041 = vpop.f32.mrb[0].mxu0
        %v2042 = vpop.f32.mrb[0].mxu0
        %v2043 = vadd.f32 0.0, %v2042
        %v2044 = vpop.f32.mrb[0].mxu0
        %2045 = vmatprep.mubr.bf16.mxu0 %v1773
        %2046 = vmatmul.mubr.bf16.gmra.mrb[0].mxu0 %v1772
        %v2047 = vpop.f32.mrb[0].mxu0
        %v2048 = vadd.f32 0.0, %v2047
        %v2049 = vpop.f32.mrb[0].mxu0
        %v2050 = vpop.f32.mrb[0].mxu0
        %v2051 = vadd.f32 0.0, %v2050
        %v2052 = vpop.f32.mrb[0].mxu0
        %2053 = vmatprep.mubr.bf16.mxu0 %v1776
        %2054 = vmatmul.mubr.bf16.gmra.mrb[0].mxu0 %v1775
        %v2055 = vpop.f32.mrb[0].mxu0
        %v2056 = vadd.f32 0.0, %v2055
        %v2057 = vpop.f32.mrb[0].mxu0
        %v2058 = vpop.f32.mrb[0].mxu0
        %v2059 = vadd.f32 0.0, %v2058
        %v2060 = vpop.f32.mrb[0].mxu0
        %2061 = vmatprep.mubr.bf16.mxu0 %v1779
        %2062 = vmatmul.mubr.bf16.gmra.mrb[0].mxu0 %v1778
        %v2063 = vpop.f32.mrb[0].mxu0
        %v2064 = vadd.f32 0.0, %v2063
        %v2065 = vpop.f32.mrb[0].mxu0
        %v2066 = vpop.f32.mrb[0].mxu0
        %v2067 = vadd.f32 0.0, %v2066
        %v2068 = vpop.f32.mrb[0].mxu0
        %2069 = vdwg.mxu0
        %2070 = vmatprep.subr.bf16.mxu0 0
        %2071 = vmatpush1.bf16.msra.mxu0 %v1941
        %2072 = vmatprep.subr.bf16.mxu0 0
        %2073 = vmatpush1.bf16.msra.mxu0 %v1942
        %2074 = vmatprep.subr.bf16.mxu0 0
        %2075 = vmatpush1.bf16.msra.mxu0 %v1943
        %2076 = vmatprep.subr.bf16.mxu0 0
        %2077 = vmatpush1.bf16.msra.mxu0 %v1944
        %2078 = vmatprep.subr.bf16.mxu0 0
        %2079 = vmatpush1.bf16.msra.mxu0 %v1945
        %2080 = vmatprep.subr.bf16.mxu0 0
        %2081 = vmatpush1.bf16.msra.mxu0 %v1946
        %2082 = vmatprep.subr.bf16.mxu0 0
        %2083 = vmatpush1.bf16.msra.mxu0 %v1947
        %2084 = vmatprep.subr.bf16.mxu0 0
        %2085 = vmatpush1.bf16.msra.mxu0 %v1948
        %2086 = vmatprep.subr.bf16.mxu0 0
        %2087 = vmatpush1.bf16.msra.mxu0 0
        %2088 = vmatprep.subr.bf16.mxu0 0
        %2089 = vmatpush1.bf16.msra.mxu0 0
        %2090 = vmatprep.subr.bf16.mxu0 0
        %2091 = vmatpush1.bf16.msra.mxu0 0
        %2092 = vmatprep.subr.bf16.mxu0 0
        %2093 = vmatpush1.bf16.msra.mxu0 0
        %2094 = vmatprep.subr.bf16.mxu0 0
        %2095 = vmatpush1.bf16.msra.mxu0 0
        %2096 = vmatprep.subr.bf16.mxu0 0
        %2097 = vmatpush1.bf16.msra.mxu0 0
        %2098 = vmatprep.subr.bf16.mxu0 0
        %2099 = vmatpush1.bf16.msra.mxu0 0
        %2100 = vmatprep.subr.bf16.mxu0 0
        %2101 = vmatpush1.bf16.msra.mxu0 0
        %2102 = vmatprep.mubr.bf16.mxu0 0
        %2103 = vmatmul.mubr.bf16.gmra.mrb[0].mxu0 %v1759
        %v2104 = vpop.f32.mrb[0].mxu0
        %v2105 = vadd.f32 %v2008, %v2104
        %v2106 = vpop.f32.mrb[0].mxu0
        %v2107 = vpop.f32.mrb[0].mxu0
        %v2108 = vadd.f32 %v2011, %v2107
        %v2109 = vpop.f32.mrb[0].mxu0
        %2110 = vmatprep.mubr.bf16.mxu0 0
        %2111 = vmatmul.mubr.bf16.gmra.mrb[0].mxu0 %v1762
        %v2112 = vpop.f32.mrb[0].mxu0
        %v2113 = vadd.f32 %v2016, %v2112
        %v2114 = vpop.f32.mrb[0].mxu0
        %v2115 = vpop.f32.mrb[0].mxu0
        %v2116 = vadd.f32 %v2019, %v2115
        %v2117 = vpop.f32.mrb[0].mxu0
        %2118 = vmatprep.mubr.bf16.mxu0 0
        %2119 = vmatmul.mubr.bf16.gmra.mrb[0].mxu0 %v1765
        %v2120 = vpop.f32.mrb[0].mxu0
        %v2121 = vadd.f32 %v2024, %v2120
        %v2122 = vpop.f32.mrb[0].mxu0
        %v2123 = vpop.f32.mrb[0].mxu0
        %v2124 = vadd.f32 %v2027, %v2123
        %v2125 = vpop.f32.mrb[0].mxu0
        %2126 = vmatprep.mubr.bf16.mxu0 0
        %2127 = vmatmul.mubr.bf16.gmra.mrb[0].mxu0 %v1768
        %v2128 = vpop.f32.mrb[0].mxu0
        %v2129 = vadd.f32 %v2032, %v2128
        %v2130 = vpop.f32.mrb[0].mxu0
        %v2131 = vpop.f32.mrb[0].mxu0
        %v2132 = vadd.f32 %v2035, %v2131
        %v2133 = vpop.f32.mrb[0].mxu0
        %2134 = vmatprep.mubr.bf16.mxu0 0
        %2135 = vmatmul.mubr.bf16.gmra.mrb[0].mxu0 %v1771
        %v2136 = vpop.f32.mrb[0].mxu0
        %v2137 = vadd.f32 %v2040, %v2136
        %v2138 = vpop.f32.mrb[0].mxu0
        %v2139 = vpop.f32.mrb[0].mxu0
        %v2140 = vadd.f32 %v2043, %v2139
        %v2141 = vpop.f32.mrb[0].mxu0
        %2142 = vmatprep.mubr.bf16.mxu0 0
        %2143 = vmatmul.mubr.bf16.gmra.mrb[0].mxu0 %v1774
        %v2144 = vpop.f32.mrb[0].mxu0
        %v2145 = vadd.f32 %v2048, %v2144
        %v2146 = vpop.f32.mrb[0].mxu0
        %v2147 = vpop.f32.mrb[0].mxu0
        %v2148 = vadd.f32 %v2051, %v2147
        %v2149 = vpop.f32.mrb[0].mxu0
        %2150 = vmatprep.mubr.bf16.mxu0 0
        %2151 = vmatmul.mubr.bf16.gmra.mrb[0].mxu0 %v1777
        %v2152 = vpop.f32.mrb[0].mxu0
        %v2153 = vadd.f32 %v2056, %v2152
        %v2154 = vpop.f32.mrb[0].mxu0
        %v2155 = vpop.f32.mrb[0].mxu0
        %v2156 = vadd.f32 %v2059, %v2155
        %v2157 = vpop.f32.mrb[0].mxu0
        %2158 = vmatprep.mubr.bf16.mxu0 0
        %2159 = vmatmul.mubr.bf16.gmra.mrb[0].mxu0 %v1780
        %v2160 = vpop.f32.mrb[0].mxu0
        %v2161 = vadd.f32 %v2064, %v2160
        %v2162 = vpop.f32.mrb[0].mxu0
        %v2163 = vpop.f32.mrb[0].mxu0
        %v2164 = vadd.f32 %v2067, %v2163
        %v2165 = vpop.f32.mrb[0].mxu0
        %2166 = vdwg.mxu0
        %v2167 = vld [vmem:[%s5] sm:$0xf]
        %v2168 = vld [vmem:[%s5 + $0x4] sm:$0xf]
        %v2171 = vunpack.c.l.b16 %v2167
        %v2172 = vunpack.c.l.b16 %v2168
        %v2173 = vpack.c.b16 %v2172, %v2171
        %2175 = vmatprep.subr.bf16.mxu0 0
        %2176 = vmatpush1.bf16.msra.mxu0 %v2173
        %2177 = vmatprep.subr.bf16.mxu0 0
        %2178 = vmatpush1.bf16.msra.mxu0 0
        %2179 = vmatprep.subr.bf16.mxu0 0
        %2180 = vmatpush1.bf16.msra.mxu0 0
        %2181 = vmatprep.subr.bf16.mxu0 0
        %2182 = vmatpush1.bf16.msra.mxu0 0
        %2183 = vmatprep.subr.bf16.mxu0 0
        %2184 = vmatpush1.bf16.msra.mxu0 0
        %2185 = vmatprep.subr.bf16.mxu0 0
        %2186 = vmatpush1.bf16.msra.mxu0 0
        %2187 = vmatprep.subr.bf16.mxu0 0
        %2188 = vmatpush1.bf16.msra.mxu0 0
        %2189 = vmatprep.subr.bf16.mxu0 0
        %2190 = vmatpush1.bf16.msra.mxu0 0
        %2191 = vmatprep.subr.bf16.mxu0 0
        %2192 = vmatpush1.bf16.msra.mxu0 0
        %2193 = vmatprep.subr.bf16.mxu0 0
        %2194 = vmatpush1.bf16.msra.mxu0 0
        %2195 = vmatprep.subr.bf16.mxu0 0
        %2196 = vmatpush1.bf16.msra.mxu0 0
        %2197 = vmatprep.subr.bf16.mxu0 0
        %2198 = vmatpush1.bf16.msra.mxu0 0
        %2199 = vmatprep.subr.bf16.mxu0 0
        %2200 = vmatpush1.bf16.msra.mxu0 0
        %2201 = vmatprep.subr.bf16.mxu0 0
        %2202 = vmatpush1.bf16.msra.mxu0 0
        %2203 = vmatprep.subr.bf16.mxu0 0
        %2204 = vmatpush1.bf16.msra.mxu0 0
        %2205 = vmatprep.subr.bf16.mxu0 0
        %2206 = vmatpush1.bf16.msra.mxu0 0
        %2207 = vmatprep.mubr.bf16.mxu0 0
        %2208 = vmatmul.mubr.bf16.gmra.mrb[0].mxu0 %v604
        %v2209 = vpop.f32.mrb[0].mxu0
        %v2210 = vadd.f32 0.0, %v2209
        %v2211 = vpop.f32.mrb[0].mxu0
        %v2212 = vpop.f32.mrb[0].mxu0
        %v2213 = vadd.f32 0.0, %v2212
        %v2214 = vpop.f32.mrb[0].mxu0
        %2215 = vmatprep.mubr.bf16.mxu0 0
        %2216 = vmatmul.mubr.bf16.gmra.mrb[0].mxu0 %v607
        %v2217 = vpop.f32.mrb[0].mxu0
        %v2218 = vadd.f32 0.0, %v2217
        %v2219 = vpop.f32.mrb[0].mxu0
        %v2220 = vpop.f32.mrb[0].mxu0
        %v2221 = vadd.f32 0.0, %v2220
        %v2222 = vpop.f32.mrb[0].mxu0
        %2223 = vmatprep.mubr.bf16.mxu0 0
        %2224 = vmatmul.mubr.bf16.gmra.mrb[0].mxu0 %v610
        %v2225 = vpop.f32.mrb[0].mxu0
        %v2226 = vadd.f32 0.0, %v2225
        %v2227 = vpop.f32.mrb[0].mxu0
        %v2228 = vpop.f32.mrb[0].mxu0
        %v2229 = vadd.f32 0.0, %v2228
        %v2230 = vpop.f32.mrb[0].mxu0
        %2231 = vmatprep.mubr.bf16.mxu0 0
        %2232 = vmatmul.mubr.bf16.gmra.mrb[0].mxu0 %v613
        %v2233 = vpop.f32.mrb[0].mxu0
        %v2234 = vadd.f32 0.0, %v2233
        %v2235 = vpop.f32.mrb[0].mxu0
        %v2236 = vpop.f32.mrb[0].mxu0
        %v2237 = vadd.f32 0.0, %v2236
        %v2238 = vpop.f32.mrb[0].mxu0
        %2239 = vmatprep.mubr.bf16.mxu0 0
        %2240 = vmatmul.mubr.bf16.gmra.mrb[0].mxu0 %v616
        %v2241 = vpop.f32.mrb[0].mxu0
        %v2242 = vadd.f32 0.0, %v2241
        %v2243 = vpop.f32.mrb[0].mxu0
        %v2244 = vpop.f32.mrb[0].mxu0
        %v2245 = vadd.f32 0.0, %v2244
        %v2246 = vpop.f32.mrb[0].mxu0
        %2247 = vmatprep.mubr.bf16.mxu0 0
        %2248 = vmatmul.mubr.bf16.gmra.mrb[0].mxu0 %v619
        %v2249 = vpop.f32.mrb[0].mxu0
        %v2250 = vadd.f32 0.0, %v2249
        %v2251 = vpop.f32.mrb[0].mxu0
        %v2252 = vpop.f32.mrb[0].mxu0
        %v2253 = vadd.f32 0.0, %v2252
        %v2254 = vpop.f32.mrb[0].mxu0
        %2255 = vmatprep.mubr.bf16.mxu0 0
        %2256 = vmatmul.mubr.bf16.gmra.mrb[0].mxu0 %v622
        %v2257 = vpop.f32.mrb[0].mxu0
        %v2258 = vadd.f32 0.0, %v2257
        %v2259 = vpop.f32.mrb[0].mxu0
        %v2260 = vpop.f32.mrb[0].mxu0
        %v2261 = vadd.f32 0.0, %v2260
        %v2262 = vpop.f32.mrb[0].mxu0
        %2263 = vmatprep.mubr.bf16.mxu0 0
        %2264 = vmatmul.mubr.bf16.gmra.mrb[0].mxu0 %v625
        %v2265 = vpop.f32.mrb[0].mxu0
        %v2266 = vadd.f32 0.0, %v2265
        %v2267 = vpop.f32.mrb[0].mxu0
        %v2268 = vpop.f32.mrb[0].mxu0
        %v2269 = vadd.f32 0.0, %v2268
        %v2270 = vpop.f32.mrb[0].mxu0
        %2271 = vdwg.mxu0
        %v2272 = vmul.f32 %v2105, %v2210
        %v2273 = vmul.f32 %v2108, %v2213
        %v2274 = vmul.f32 %v2113, %v2218
        %v2275 = vmul.f32 %v2116, %v2221
        %v2276 = vmul.f32 %v2121, %v2226
        %v2277 = vmul.f32 %v2124, %v2229
        %v2278 = vmul.f32 %v2129, %v2234
        %v2279 = vmul.f32 %v2132, %v2237
        %v2280 = vmul.f32 %v2137, %v2242
        %v2281 = vmul.f32 %v2140, %v2245
        %v2282 = vmul.f32 %v2145, %v2250
        %v2283 = vmul.f32 %v2148, %v2253
        %v2284 = vmul.f32 %v2153, %v2258
        %v2285 = vmul.f32 %v2156, %v2261
        %v2286 = vmul.f32 %v2161, %v2266
        %v2287 = vmul.f32 %v2164, %v2269
        %v2288 = vpack.c.bf16 %v2273, %v2272
        %v2289 = vpack.c.bf16 %v2275, %v2274
        %v2290 = vpack.c.bf16 %v2277, %v2276
        %v2291 = vpack.c.bf16 %v2279, %v2278
        %v2292 = vpack.c.bf16 %v2281, %v2280
        %v2293 = vpack.c.bf16 %v2283, %v2282
        %v2294 = vpack.c.bf16 %v2285, %v2284
        %v2295 = vpack.c.bf16 %v2287, %v2286
        %v2296 = vld [vmem:[%s6] sm:$0xf]
        %v2297 = vld [vmem:[%s6 + $0x4] sm:$0xf]
        %v2298 = vld [vmem:[%s6 + $0x8] sm:$0xf]
        %v2299 = vld [vmem:[%s6 + $0xc] sm:$0xf]
        %v2300 = vld [vmem:[%s6 + $0x10] sm:$0xf]
        %v2301 = vld [vmem:[%s6 + $0x14] sm:$0xf]
        %v2302 = vld [vmem:[%s6 + $0x18] sm:$0xf]
        %v2303 = vld [vmem:[%s6 + $0x1c] sm:$0xf]
        %v2304 = vld [vmem:[%s6 + $0x20] sm:$0xf]
        %v2305 = vld [vmem:[%s6 + $0x24] sm:$0xf]
        %v2306 = vld [vmem:[%s6 + $0x28] sm:$0xf]
        %v2307 = vld [vmem:[%s6 + $0x2c] sm:$0xf]
        %v2308 = vld [vmem:[%s6 + $0x30] sm:$0xf]
        %v2309 = vld [vmem:[%s6 + $0x34] sm:$0xf]
        %v2310 = vld [vmem:[%s6 + $0x38] sm:$0xf]
        %v2311 = vld [vmem:[%s6 + $0x3c] sm:$0xf]
        %v2328 = vunpack.c.l.b16 %v2296
        %v2329 = vunpack.c.l.b16 %v2297
        %v2330 = vunpack.c.l.b16 %v2298
        %v2331 = vunpack.c.l.b16 %v2299
        %v2332 = vunpack.c.l.b16 %v2300
        %v2333 = vunpack.c.l.b16 %v2301
        %v2334 = vunpack.c.l.b16 %v2302
        %v2335 = vunpack.c.l.b16 %v2303
        %v2336 = vunpack.c.l.b16 %v2304
        %v2337 = vunpack.c.l.b16 %v2305
        %v2338 = vunpack.c.l.b16 %v2306
        %v2339 = vunpack.c.l.b16 %v2307
        %v2340 = vunpack.c.l.b16 %v2308
        %v2341 = vunpack.c.l.b16 %v2309
        %v2342 = vunpack.c.l.b16 %v2310
        %v2343 = vunpack.c.l.b16 %v2311
        %v2344 = vpack.c.b16 %v2329, %v2328
        %v2345 = vpack.c.b16 %v2331, %v2330
        %v2346 = vpack.c.b16 %v2333, %v2332
        %v2347 = vpack.c.b16 %v2335, %v2334
        %v2348 = vpack.c.b16 %v2337, %v2336
        %v2349 = vpack.c.b16 %v2339, %v2338
        %v2350 = vpack.c.b16 %v2341, %v2340
        %v2351 = vpack.c.b16 %v2343, %v2342
        %2360 = vmatprep.subr.bf16.mxu0 0
        %2361 = vmatpush1.bf16.msra.mxu0 %v2344
        %2362 = vmatprep.subr.bf16.mxu0 0
        %2363 = vmatpush1.bf16.msra.mxu0 %v2345
        %2364 = vmatprep.subr.bf16.mxu0 0
        %2365 = vmatpush1.bf16.msra.mxu0 %v2346
        %2366 = vmatprep.subr.bf16.mxu0 0
        %2367 = vmatpush1.bf16.msra.mxu0 %v2347
        %2368 = vmatprep.subr.bf16.mxu0 0
        %2369 = vmatpush1.bf16.msra.mxu0 %v2348
        %2370 = vmatprep.subr.bf16.mxu0 0
        %2371 = vmatpush1.bf16.msra.mxu0 %v2349
        %2372 = vmatprep.subr.bf16.mxu0 0
        %2373 = vmatpush1.bf16.msra.mxu0 %v2350
        %2374 = vmatprep.subr.bf16.mxu0 0
        %2375 = vmatpush1.bf16.msra.mxu0 %v2351
        %2376 = vmatprep.subr.bf16.mxu0 0
        %2377 = vmatpush1.bf16.msra.mxu0 0
        %2378 = vmatprep.subr.bf16.mxu0 0
        %2379 = vmatpush1.bf16.msra.mxu0 0
        %2380 = vmatprep.subr.bf16.mxu0 0
        %2381 = vmatpush1.bf16.msra.mxu0 0
        %2382 = vmatprep.subr.bf16.mxu0 0
        %2383 = vmatpush1.bf16.msra.mxu0 0
        %2384 = vmatprep.subr.bf16.mxu0 0
        %2385 = vmatpush1.bf16.msra.mxu0 0
        %2386 = vmatprep.subr.bf16.mxu0 0
        %2387 = vmatpush1.bf16.msra.mxu0 0
        %2388 = vmatprep.subr.bf16.mxu0 0
        %2389 = vmatpush1.bf16.msra.mxu0 0
        %2390 = vmatprep.subr.bf16.mxu0 0
        %2391 = vmatpush1.bf16.msra.mxu0 0
        %2392 = vmatprep.mubr.bf16.mxu0 0
        %2393 = vmatmul.mubr.bf16.gmra.mrb[0].mxu0 %v2288
        %v2394 = vpop.f32.mrb[0].mxu0
        %v2395 = vadd.f32 0.0, %v2394
        %v2396 = vpop.f32.mrb[0].mxu0
        %v2397 = vpop.f32.mrb[0].mxu0
        %v2398 = vadd.f32 0.0, %v2397
        %v2399 = vpop.f32.mrb[0].mxu0
        %2400 = vmatprep.mubr.bf16.mxu0 0
        %2401 = vmatmul.mubr.bf16.gmra.mrb[0].mxu0 %v2289
        %v2402 = vpop.f32.mrb[0].mxu0
        %v2403 = vadd.f32 0.0, %v2402
        %v2404 = vpop.f32.mrb[0].mxu0
        %v2405 = vpop.f32.mrb[0].mxu0
        %v2406 = vadd.f32 0.0, %v2405
        %v2407 = vpop.f32.mrb[0].mxu0
        %2408 = vmatprep.mubr.bf16.mxu0 0
        %2409 = vmatmul.mubr.bf16.gmra.mrb[0].mxu0 %v2290
        %v2410 = vpop.f32.mrb[0].mxu0
        %v2411 = vadd.f32 0.0, %v2410
        %v2412 = vpop.f32.mrb[0].mxu0
        %v2413 = vpop.f32.mrb[0].mxu0
        %v2414 = vadd.f32 0.0, %v2413
        %v2415 = vpop.f32.mrb[0].mxu0
        %2416 = vmatprep.mubr.bf16.mxu0 0
        %2417 = vmatmul.mubr.bf16.gmra.mrb[0].mxu0 %v2291
        %v2418 = vpop.f32.mrb[0].mxu0
        %v2419 = vadd.f32 0.0, %v2418
        %v2420 = vpop.f32.mrb[0].mxu0
        %v2421 = vpop.f32.mrb[0].mxu0
        %v2422 = vadd.f32 0.0, %v2421
        %v2423 = vpop.f32.mrb[0].mxu0
        %2424 = vmatprep.mubr.bf16.mxu0 0
        %2425 = vmatmul.mubr.bf16.gmra.mrb[0].mxu0 %v2292
        %v2426 = vpop.f32.mrb[0].mxu0
        %v2427 = vadd.f32 0.0, %v2426
        %v2428 = vpop.f32.mrb[0].mxu0
        %v2429 = vpop.f32.mrb[0].mxu0
        %v2430 = vadd.f32 0.0, %v2429
        %v2431 = vpop.f32.mrb[0].mxu0
        %2432 = vmatprep.mubr.bf16.mxu0 0
        %2433 = vmatmul.mubr.bf16.gmra.mrb[0].mxu0 %v2293
        %v2434 = vpop.f32.mrb[0].mxu0
        %v2435 = vadd.f32 0.0, %v2434
        %v2436 = vpop.f32.mrb[0].mxu0
        %v2437 = vpop.f32.mrb[0].mxu0
        %v2438 = vadd.f32 0.0, %v2437
        %v2439 = vpop.f32.mrb[0].mxu0
        %2440 = vmatprep.mubr.bf16.mxu0 0
        %2441 = vmatmul.mubr.bf16.gmra.mrb[0].mxu0 %v2294
        %v2442 = vpop.f32.mrb[0].mxu0
        %v2443 = vadd.f32 0.0, %v2442
        %v2444 = vpop.f32.mrb[0].mxu0
        %v2445 = vpop.f32.mrb[0].mxu0
        %v2446 = vadd.f32 0.0, %v2445
        %v2447 = vpop.f32.mrb[0].mxu0
        %2448 = vmatprep.mubr.bf16.mxu0 0
        %2449 = vmatmul.mubr.bf16.gmra.mrb[0].mxu0 %v2295
        %v2450 = vpop.f32.mrb[0].mxu0
        %v2451 = vadd.f32 0.0, %v2450
        %v2452 = vpop.f32.mrb[0].mxu0
        %v2453 = vpop.f32.mrb[0].mxu0
        %v2454 = vadd.f32 0.0, %v2453
        %v2455 = vpop.f32.mrb[0].mxu0
        %2456 = vdwg.mxu0
        %v2457 = vld [vmem:[%s382] sm:$0xf]
        %v2458 = vld [vmem:[%s382 + $0x4] sm:$0xf]
        %v2459 = vpack.c.bf16 %v2398, %v2395
        %v2460 = vpack.c.bf16 %v2406, %v2403
        %v2461 = vpack.c.bf16 %v2414, %v2411
        %v2462 = vpack.c.bf16 %v2422, %v2419
        %v2463 = vpack.c.bf16 %v2430, %v2427
        %v2464 = vpack.c.bf16 %v2438, %v2435
        %v2465 = vpack.c.bf16 %v2446, %v2443
        %v2466 = vpack.c.bf16 %v2454, %v2451
        %v2469 = vunpack.c.l.b16 %v2457
        %v2470 = vunpack.c.l.b16 %v2458
        %v2471 = vpack.c.b16 %v2470, %v2469
        %2473 = vmatprep.subr.bf16.mxu0 0
        %2474 = vmatpush1.bf16.msra.mxu0 %v2459
        %2475 = vmatprep.subr.bf16.mxu0 0
        %2476 = vmatpush1.bf16.msra.mxu0 %v2460
        %2477 = vmatprep.subr.bf16.mxu0 0
        %2478 = vmatpush1.bf16.msra.mxu0 %v2461
        %2479 = vmatprep.subr.bf16.mxu0 0
        %2480 = vmatpush1.bf16.msra.mxu0 %v2462
        %2481 = vmatprep.subr.bf16.mxu0 0
        %2482 = vmatpush1.bf16.msra.mxu0 %v2463
        %2483 = vmatprep.subr.bf16.mxu0 0
        %2484 = vmatpush1.bf16.msra.mxu0 %v2464
        %2485 = vmatprep.subr.bf16.mxu0 0
        %2486 = vmatpush1.bf16.msra.mxu0 %v2465
        %2487 = vmatprep.subr.bf16.mxu0 0
        %2488 = vmatpush1.bf16.msra.mxu0 %v2466
        %2489 = vmatprep.subr.bf16.mxu0 0
        %2490 = vmatpush1.bf16.msra.mxu0 0
        %2491 = vmatprep.subr.bf16.mxu0 0
        %2492 = vmatpush1.bf16.msra.mxu0 0
        %2493 = vmatprep.subr.bf16.mxu0 0
        %2494 = vmatpush1.bf16.msra.mxu0 0
        %2495 = vmatprep.subr.bf16.mxu0 0
        %2496 = vmatpush1.bf16.msra.mxu0 0
        %2497 = vmatprep.subr.bf16.mxu0 0
        %2498 = vmatpush1.bf16.msra.mxu0 0
        %2499 = vmatprep.subr.bf16.mxu0 0
        %2500 = vmatpush1.bf16.msra.mxu0 0
        %2501 = vmatprep.subr.bf16.mxu0 0
        %2502 = vmatpush1.bf16.msra.mxu0 0
        %2503 = vmatprep.subr.bf16.mxu0 0
        %2504 = vmatpush1.bf16.msra.mxu0 0
        %2505 = vmatprep.mubr.bf16.mxu0 0
        %2506 = vmatmul.mubr.bf16.gmra.mrb[0].mxu0 %v2471
        %v2507 = vpop.f32.mrb[0].mxu0
        %v2508 = vadd.f32 0.0, %v2507
        %v2509 = vpop.f32.mrb[0].mxu0
        %v2510 = vpop.f32.mrb[0].mxu0
        %v2511 = vadd.f32 0.0, %v2510
        %v2512 = vpop.f32.mrb[0].mxu0
        %2513 = vdwg.mxu0
        %v2514 = vmul.f32 %v2508, 0.35355338
        %v2515 = vmul.f32 %v2511, 0.35355338
        %vm2516 = vcmask 64512
        %2517 = vst.msk [vmem:[%s387] sm:$0xff] %vm2516, %v2514
        %2518 = vst.msk [vmem:[%s387 + $0x8] sm:$0xff] %vm2516, %v2515
        %p2519 = scmp.lt.s32.totalorder %s21, 1
        %s2520 = scalar_select %p2519, %s21, 1
        %s2521 = smul.addr %s2520, 2
        %s2522 = smul.addr %s2521, 8
        %s2523 = scalar_lea.vmem %s9, %s2522
        // Predicated region
        $region61: #{tpu_custom_call.1} parent=55 // pred_check
          %p2524 = pneg %p243
        $region62: #{tpu_custom_call.1} parent=55 // pred_check_branch
          %2526 = sbr.rel (%p2524) target = $region64
        $region63: #{tpu_custom_call.1} parent=55 // pred_region
          _
        $region64: #{tpu_custom_call.1} parent=55 // pred_fallthru
          _
      $region56: #{tpu_custom_call.1} parent=5 // pred_fallthru
        _
      %p2527 = scmp.le.s32.totalorder 2, %s16
      // Predicated region
      $region65: #{tpu_custom_call.1} parent=5 // pred_check
        %p2528 = pneg %p2527
      $region66: #{tpu_custom_call.1} parent=5 // pred_check_branch
        %2530 = sbr.rel (%p2528) target = $region68
      $region67: #{tpu_custom_call.1} parent=5 // pred_region
        %s2531 = ssub.s32 %s16, 2
        // Predicated region
        $region69: #{tpu_custom_call.1} parent=67 // pred_check
          %p2532 = pneg %p249
        $region70: #{tpu_custom_call.1} parent=67 // pred_check_branch
          %2534 = sbr.rel (%p2532) target = $region72
        $region71: #{tpu_custom_call.1} parent=67 // pred_region
          %p2535 = scmp.lt.s32.totalorder %s22, 1
          %s2536 = scalar_select %p2535, %s22, 1
          %s2537 = smul.addr %s2536, 2
          %s2538 = smul.addr %s2537, 8
          %s2539 = scalar_lea.vmem %s9, %s2538
        $region72: #{tpu_custom_call.1} parent=67 // pred_fallthru
          _
      $region68: #{tpu_custom_call.1} parent=5 // pred_fallthru
        _
    $region6: #{tpu_custom_call.1} parent=1 // loop_footer
      %s20 = sadd.s32 1, %s16
    $region7: #{tpu_custom_call.1} parent=1 // loop_footer_branch
      %15 = sbr.rel target = $region3
    $region8: #{tpu_custom_call.1} parent=1 // loop_exit
      _
    %2540 = vsyncpa [#allocation3], 1
    %s2541 = scalar_lea.sflag [#allocation3], 1
    %2542 = vsyncpa %s2541, 1

</llo_original>
